<compile_context>
chip_gen: v5e
topology: v5e:2x2
jax: 0.10.0
libtpu: 0.0.40
codegen_flags: <defaults>
</compile_context>

<pallas_src>
import numpy as np

import jax
import jax.numpy as jnp
from jax.experimental import pallas as pl
from jax.experimental.pallas import tpu as pltpu


# ------------------------------- fused kernel ------------------------------- #

def _make_fused_kernel(DH, n_taps):
    def kernel(x_ref, w1_ref, b1_ref, s_ref, w2_ref, b2_ref, w3_ref, b3_ref, o_ref):
        xb = x_ref[0]                                            # (DH, W*Cin) f32

        # conv1 (1x1x1) + bn1 + relu — block-diag-over-w weight keeps the packing.
        h1 = jnp.dot(xb.astype(jnp.bfloat16), w1_ref[...],
                     preferred_element_type=jnp.float32)
        h1 = jnp.maximum(h1 + b1_ref[...], 0.0)                  # (DH, W*Cmid) f32
        h1b = h1.astype(jnp.bfloat16)

        # All 9 (dd,dh) row-shifted (and depth/height-boundary-masked) copies of h1
        # via one exact 0/1 shift matmul: u[t*DH + r] = h1[r + dd*H + dh] or 0.
        u = jnp.dot(s_ref[...], h1b, preferred_element_type=jnp.float32)
        ub = u.astype(jnp.bfloat16)                              # exact (values of h1b)

        # grouped conv2 (3x3x3) + bn2 + relu: 9 accumulating dots; the dw shift,
        # the w boundary and the group structure live in the block-tridiagonal
        # (W*Cmid, W*Cmid) weights.
        acc = jnp.dot(ub[0:DH, :], w2_ref[0], preferred_element_type=jnp.float32)
        for t in range(1, n_taps):
            acc = acc + jnp.dot(ub[t * DH:(t + 1) * DH, :], w2_ref[t],
                                preferred_element_type=jnp.float32)
        h2 = jnp.maximum(acc + b2_ref[...], 0.0)                 # (DH, W*Cmid) f32
        h2b = h2.astype(jnp.bfloat16)

        # conv3 (1x1x1) + bn3 + residual + relu — lane-dense (DH, W*Cout) store.
        y3 = jnp.dot(h2b, w3_ref[...], preferred_element_type=jnp.float32)
        o_ref[0] = jnp.maximum(y3 + b3_ref[...] + xb, 0.0).astype(o_ref.dtype)

    return kernel


# ------------------------------ glue / wrapper ------------------------------ #

def _fold_bn(bn, eps=1e-5):
    gamma, beta, mean, var = bn
    scale = gamma / jnp.sqrt(var + eps)
    shift = beta - mean * scale
    return scale, shift


def resnext_bottleneck_forward(x_ncdhw, w1, bn1, w2, bn2, w3, bn3, cardinality):
    """PyTorch ResNeXtBottleneck.forward with stride=1, downsample=None (eval BN)."""
    N, Cin, D, H, W = x_ncdhw.shape
    Cmid = w1.shape[0]
    Cout = w3.shape[0]
    assert Cout == Cin, "residual add requires Cout == Cin (downsample=None)"
    DH = D * H
    WCin, WCmid, WCout = W * Cin, W * Cmid, W * Cout
    n_taps = 9

    # NCDHW -> (N, D*H, W*Cin): rows=(d,h), lanes=(w,c).  No padding anywhere.
    x = jnp.transpose(x_ncdhw, (0, 2, 3, 4, 1)).reshape(N, DH, WCin)

    s1, sh1 = _fold_bn(bn1)
    s2, sh2 = _fold_bn(bn2)
    s3, sh3 = _fold_bn(bn3)

    # conv1 / conv3 (1x1x1) as block-diagonal-over-w channel matmuls (BN folded).
    w1m = jnp.transpose(w1[:, :, 0, 0, 0]) * s1[None, :]            # (Cin, Cmid)
    w3m = jnp.transpose(w3[:, :, 0, 0, 0]) * s3[None, :]            # (Cmid, Cout)
    eye_w = jnp.eye(W, dtype=jnp.float32)
    w1c = jnp.kron(eye_w, w1m).astype(jnp.bfloat16)                  # (W*Cin, W*Cmid)
    w3c = jnp.kron(eye_w, w3m).astype(jnp.bfloat16)                  # (W*Cmid, W*Cout)
    b1p = jnp.tile(sh1, W)[None, :]                                  # (1, W*Cmid) f32
    b3p = jnp.tile(sh3, W)[None, :]                                  # (1, W*Cout) f32

    # Grouped 3x3x3 conv -> dense per-tap (Cmid, Cmid) weights (group block-diag,
    # BN2 scale folded into the output channels).
    ipg = Cmid // cardinality
    opg = Cmid // cardinality
    dense = jnp.zeros((3, 3, 3, Cmid, Cmid), jnp.float32)            # [kd,kh,kw, ci, co]
    for g in range(cardinality):
        blk = jnp.transpose(w2[g * opg:(g + 1) * opg], (2, 3, 4, 1, 0))  # (3,3,3, ipg, opg)
        dense = dense.at[:, :, :,
                         g * ipg:(g + 1) * ipg,
                         g * opg:(g + 1) * opg].set(blk)
    dense = dense * s2[None, None, None, None, :]

    # Per (dd,dh): block-tridiagonal (W*Cmid, W*Cmid) weight folding the dw shift
    # and the w boundary:  W2c[w_in*Cmid+ci, w_out*Cmid+co] = dense[.., w_in-w_out][ci,co].
    w2c_list = []
    for dd in (-1, 0, 1):
        for dh in (-1, 0, 1):
            m = jnp.zeros((WCmid, WCmid), jnp.float32)
            for dw in (-1, 0, 1):
                e = jnp.eye(W, k=-dw, dtype=jnp.float32)   # e[w_in,w_out]=1 iff w_in-w_out==dw
                m = m + jnp.kron(e, dense[dd + 1, dh + 1, dw + 1])
            w2c_list.append(m)
    w2c = jnp.stack(w2c_list).astype(jnp.bfloat16)                    # (9, W*Cmid, W*Cmid)
    b2p = jnp.tile(sh2, W)[None, :]                                   # (1, W*Cmid) f32

    # Exact 0/1 row-shift matrices for the 9 (dd,dh) taps (includes d/h boundary).
    s_np = np.zeros((n_taps * DH, DH), np.float32)
    t = 0
    for dd in (-1, 0, 1):
        for dh in (-1, 0, 1):
            for d in range(D):
                for h in range(H):
                    if 0 <= d + dd < D and 0 <= h + dh < H:
                        s_np[t * DH + d * H + h, (d + dd) * H + (h + dh)] = 1.0
            t += 1
    s_shift = jnp.asarray(s_np, jnp.bfloat16)                         # (9*DH, DH)

    kernel = _make_fused_kernel(DH, n_taps)

    def cspec(shape):
        return pl.BlockSpec(shape, lambda n, s=len(shape): (0,) * s)

    flops = 2 * N * (DH * WCin * WCmid            # conv1
                     + n_taps * DH * DH * WCmid   # row-shift matmul
                     + n_taps * DH * WCmid * WCmid  # conv2
                     + DH * WCmid * WCout)        # conv3
    bytes_accessed = (2 * N * DH * WCin * 4                               # x in + out
                      + (WCin * WCmid + n_taps * DH * DH
                         + n_taps * WCmid * WCmid + WCmid * WCout) * 2    # bf16 weights
                      + (2 * WCmid + WCout) * 4)                          # f32 shifts

    out = pl.pallas_call(
        kernel,
        out_shape=jax.ShapeDtypeStruct((N, DH, WCout), jnp.float32),
        grid_spec=pltpu.PrefetchScalarGridSpec(
            num_scalar_prefetch=0,
            grid=(N,),
            in_specs=[
                pl.BlockSpec((1, DH, WCin), lambda n: (n, 0, 0)),   # x (lane-dense, no pad)
                cspec((WCin, WCmid)), cspec((1, WCmid)),            # conv1 weight / shift
                cspec((n_taps * DH, DH)),                           # row-shift matrix
                cspec((n_taps, WCmid, WCmid)), cspec((1, WCmid)),   # conv2 weights / shift
                cspec((WCmid, WCout)), cspec((1, WCout)),           # conv3 weight / shift
            ],
            out_specs=pl.BlockSpec((1, DH, WCout), lambda n: (n, 0, 0)),
        ),
        compiler_params=pltpu.CompilerParams(
            dimension_semantics=("parallel",)),
        cost_estimate=pl.CostEstimate(flops=flops, transcendentals=0,
                                      bytes_accessed=bytes_accessed),
    )(x, w1c, b1p, s_shift, w2c, b2p, w3c, b3p)

    out = out.reshape(N, D, H, W, Cout)
    return jnp.transpose(out, (0, 4, 1, 2, 3))                        # back to NCDHW


# ------------------------------- pure-JAX ref ------------------------------- #

def reference_forward(x_ncdhw, w1, bn1, w2, bn2, w3, bn3, cardinality, eps=1e-5):
    def bn(y, p):
        g, b, m, v = p
        return g * (y - m) / jnp.sqrt(v + eps) + b

    x = jnp.transpose(x_ncdhw, (0, 2, 3, 4, 1))
    y = jnp.einsum('ndhwc,oc->ndhwo', x, w1[:, :, 0, 0, 0])
    y = jax.nn.relu(bn(y, bn1))
    rhs = jnp.transpose(w2, (2, 3, 4, 1, 0))                   # DHWIO, I = in/groups
    y = jax.lax.conv_general_dilated(
        y, rhs, window_strides=(1, 1, 1),
        padding=((1, 1), (1, 1), (1, 1)),
        dimension_numbers=('NDHWC', 'DHWIO', 'NDHWC'),
        feature_group_count=cardinality)
    y = jax.nn.relu(bn(y, bn2))
    y = jnp.einsum('ndhwc,oc->ndhwo', y, w3[:, :, 0, 0, 0])
    y = jax.nn.relu(bn(y, bn3) + x)
    return jnp.transpose(y, (0, 4, 1, 2, 3))


# ----------------------------------- main ----------------------------------- #

if __name__ == "__main__":
    # Module config: inplanes=128, planes=64, cardinality=4, stride=1, downsample=None
    #   mid_planes = cardinality * int(planes/32) = 8
    #   output channels = planes * expansion = 128 == inplanes (residual add valid)
    N, Cin, D, H, W = 2, 128, 4, 8, 8
    planes, cardinality = 64, 4
    mid = cardinality * (planes // 32)     # 8
    Cout = planes * 2                      # 128

    key = jax.random.PRNGKey(0)
    ks = jax.random.split(key, 8)

    x = jax.random.normal(ks[0], (N, Cin, D, H, W), jnp.float32)

    # Conv weights in PyTorch layout (bias=False everywhere).
    w1 = 0.1 * jax.random.normal(ks[1], (mid, Cin, 1, 1, 1), jnp.float32)
    w2 = 0.1 * jax.random.normal(ks[2], (mid, mid // cardinality, 3, 3, 3), jnp.float32)
    w3 = 0.1 * jax.random.normal(ks[3], (Cout, mid, 1, 1, 1), jnp.float32)

    def bn_params(k, c):
        k1, k2, k3, k4 = jax.random.split(k, 4)
        gamma = 1.0 + 0.1 * jax.random.normal(k1, (c,), jnp.float32)
        beta = 0.1 * jax.random.normal(k2, (c,), jnp.float32)
        mean = 0.05 * jax.random.normal(k3, (c,), jnp.float32)
        var = jax.random.uniform(k4, (c,), jnp.float32, minval=0.5, maxval=1.5)
        return gamma, beta, mean, var

    bn1 = bn_params(ks[4], mid)
    bn2 = bn_params(ks[5], mid)
    bn3 = bn_params(ks[6], Cout)

    fwd = jax.jit(resnext_bottleneck_forward, static_argnums=7)
    out = jax.block_until_ready(fwd(x, w1, bn1, w2, bn2, w3, bn3, cardinality))

    ref = jax.block_until_ready(
        reference_forward(x, w1, bn1, w2, bn2, w3, bn3, cardinality))

    assert out.shape == (N, Cout, D, H, W), out.shape
    max_err = float(jnp.max(jnp.abs(out - ref)))
    assert max_err < 5e-2, f"max abs error {max_err}"
    print("KERNEL_OK")
</pallas_src>

<mosaic_0001>
module attributes {stable_mosaic.version = 11 : i64} {
  func.func @kernel(%arg0: i32, %arg1: memref<1x32x1024xf32, #tpu.memory_space<vmem>>, %arg2: memref<1024x64xbf16, #tpu.memory_space<vmem>>, %arg3: memref<1x64xf32, #tpu.memory_space<vmem>>, %arg4: memref<288x32xbf16, #tpu.memory_space<vmem>>, %arg5: memref<9x64x64xbf16, #tpu.memory_space<vmem>>, %arg6: memref<1x64xf32, #tpu.memory_space<vmem>>, %arg7: memref<64x1024xbf16, #tpu.memory_space<vmem>>, %arg8: memref<1x1024xf32, #tpu.memory_space<vmem>>, %arg9: memref<1x32x1024xf32, #tpu.memory_space<vmem>>) attributes {dimension_semantics = [#tpu.dimension_semantics<parallel>], iteration_bounds = array<i64: 2>, scalar_prefetch = 0 : i64, scratch_operands = 0 : i64, tpu.core_type = #tpu.core_type<tc>, window_params = [{transform_indices = @transform_0, window_bounds = array<i64: 1, 32, 1024>}, {pipeline_mode = #tpu.pipeline_mode<synchronous>, transform_indices = @transform_1, window_bounds = array<i64: 1024, 64>}, {pipeline_mode = #tpu.pipeline_mode<synchronous>, transform_indices = @transform_2, window_bounds = array<i64: 1, 64>}, {pipeline_mode = #tpu.pipeline_mode<synchronous>, transform_indices = @transform_3, window_bounds = array<i64: 288, 32>}, {pipeline_mode = #tpu.pipeline_mode<synchronous>, transform_indices = @transform_4, window_bounds = array<i64: 9, 64, 64>}, {pipeline_mode = #tpu.pipeline_mode<synchronous>, transform_indices = @transform_5, window_bounds = array<i64: 1, 64>}, {pipeline_mode = #tpu.pipeline_mode<synchronous>, transform_indices = @transform_6, window_bounds = array<i64: 64, 1024>}, {pipeline_mode = #tpu.pipeline_mode<synchronous>, transform_indices = @transform_7, window_bounds = array<i64: 1, 1024>}, {transform_indices = @transform_8, window_bounds = array<i64: 1, 32, 1024>}]} {
    %c0 = arith.constant 0 : index
    %c0_0 = arith.constant 0 : index
    %c0_1 = arith.constant 0 : index
    %0 = vector.load %arg1[%c0, %c0_0, %c0_1] : memref<1x32x1024xf32, #tpu.memory_space<vmem>>, vector<1x32x1024xf32>
    %1 = vector.shape_cast %0 : vector<1x32x1024xf32> to vector<32x1024xf32>
    %2 = arith.truncf %1 : vector<32x1024xf32> to vector<32x1024xbf16>
    %c0_2 = arith.constant 0 : index
    %c0_3 = arith.constant 0 : index
    %3 = vector.load %arg2[%c0_2, %c0_3] : memref<1024x64xbf16, #tpu.memory_space<vmem>>, vector<1024x64xbf16>
    %cst = arith.constant dense<0.000000e+00> : vector<32x64xf32>
    %4 = tpu.matmul %2, %3, %cst {dimension_numbers = #tpu.dot_dimension_numbers<[1], [0], [0], [1], [0, 0, 1, 1], [], []>} : vector<32x1024xbf16>, vector<1024x64xbf16>, vector<32x64xf32> -> vector<32x64xf32>
    %c0_4 = arith.constant 0 : index
    %c0_5 = arith.constant 0 : index
    %5 = vector.load %arg3[%c0_4, %c0_5] : memref<1x64xf32, #tpu.memory_space<vmem>>, vector<1x64xf32>
    %6 = vector.broadcast %5 : vector<1x64xf32> to vector<32x64xf32>
    %7 = arith.addf %4, %6 : vector<32x64xf32>
    %cst_6 = arith.constant 0.000000e+00 : f32
    %8 = vector.broadcast %cst_6 : f32 to vector<32x64xf32>
    %9 = arith.maximumf %7, %8 : vector<32x64xf32>
    %10 = arith.truncf %9 : vector<32x64xf32> to vector<32x64xbf16>
    %c0_7 = arith.constant 0 : index
    %c0_8 = arith.constant 0 : index
    %11 = vector.load %arg4[%c0_7, %c0_8] : memref<288x32xbf16, #tpu.memory_space<vmem>>, vector<288x32xbf16>
    %cst_9 = arith.constant dense<0.000000e+00> : vector<288x64xf32>
    %12 = tpu.matmul %11, %10, %cst_9 {dimension_numbers = #tpu.dot_dimension_numbers<[1], [0], [0], [1], [0, 0, 1, 1], [], []>} : vector<288x32xbf16>, vector<32x64xbf16>, vector<288x64xf32> -> vector<288x64xf32>
    %13 = arith.truncf %12 : vector<288x64xf32> to vector<288x64xbf16>
    %14 = vector.extract_strided_slice %13 {offsets = [0, 0], sizes = [32, 64], strides = [1, 1]} : vector<288x64xbf16> to vector<32x64xbf16>
    %c0_10 = arith.constant 0 : index
    %c0_11 = arith.constant 0 : index
    %c0_12 = arith.constant 0 : index
    %15 = vector.load %arg5[%c0_10, %c0_11, %c0_12] : memref<9x64x64xbf16, #tpu.memory_space<vmem>>, vector<1x64x64xbf16>
    %16 = vector.shape_cast %15 : vector<1x64x64xbf16> to vector<64x64xbf16>
    %cst_13 = arith.constant dense<0.000000e+00> : vector<32x64xf32>
    %17 = tpu.matmul %14, %16, %cst_13 {dimension_numbers = #tpu.dot_dimension_numbers<[1], [0], [0], [1], [0, 0, 1, 1], [], []>} : vector<32x64xbf16>, vector<64x64xbf16>, vector<32x64xf32> -> vector<32x64xf32>
    %18 = vector.extract_strided_slice %13 {offsets = [32, 0], sizes = [32, 64], strides = [1, 1]} : vector<288x64xbf16> to vector<32x64xbf16>
    %c1 = arith.constant 1 : index
    %c0_14 = arith.constant 0 : index
    %c0_15 = arith.constant 0 : index
    %19 = vector.load %arg5[%c1, %c0_14, %c0_15] : memref<9x64x64xbf16, #tpu.memory_space<vmem>>, vector<1x64x64xbf16>
    %20 = vector.shape_cast %19 : vector<1x64x64xbf16> to vector<64x64xbf16>
    %cst_16 = arith.constant dense<0.000000e+00> : vector<32x64xf32>
    %21 = tpu.matmul %18, %20, %cst_16 {dimension_numbers = #tpu.dot_dimension_numbers<[1], [0], [0], [1], [0, 0, 1, 1], [], []>} : vector<32x64xbf16>, vector<64x64xbf16>, vector<32x64xf32> -> vector<32x64xf32>
    %22 = arith.addf %17, %21 : vector<32x64xf32>
    %23 = vector.extract_strided_slice %13 {offsets = [64, 0], sizes = [32, 64], strides = [1, 1]} : vector<288x64xbf16> to vector<32x64xbf16>
    %c2 = arith.constant 2 : index
    %c0_17 = arith.constant 0 : index
    %c0_18 = arith.constant 0 : index
    %24 = vector.load %arg5[%c2, %c0_17, %c0_18] : memref<9x64x64xbf16, #tpu.memory_space<vmem>>, vector<1x64x64xbf16>
    %25 = vector.shape_cast %24 : vector<1x64x64xbf16> to vector<64x64xbf16>
    %cst_19 = arith.constant dense<0.000000e+00> : vector<32x64xf32>
    %26 = tpu.matmul %23, %25, %cst_19 {dimension_numbers = #tpu.dot_dimension_numbers<[1], [0], [0], [1], [0, 0, 1, 1], [], []>} : vector<32x64xbf16>, vector<64x64xbf16>, vector<32x64xf32> -> vector<32x64xf32>
    %27 = arith.addf %22, %26 : vector<32x64xf32>
    %28 = vector.extract_strided_slice %13 {offsets = [96, 0], sizes = [32, 64], strides = [1, 1]} : vector<288x64xbf16> to vector<32x64xbf16>
    %c3 = arith.constant 3 : index
    %c0_20 = arith.constant 0 : index
    %c0_21 = arith.constant 0 : index
    %29 = vector.load %arg5[%c3, %c0_20, %c0_21] : memref<9x64x64xbf16, #tpu.memory_space<vmem>>, vector<1x64x64xbf16>
    %30 = vector.shape_cast %29 : vector<1x64x64xbf16> to vector<64x64xbf16>
    %cst_22 = arith.constant dense<0.000000e+00> : vector<32x64xf32>
    %31 = tpu.matmul %28, %30, %cst_22 {dimension_numbers = #tpu.dot_dimension_numbers<[1], [0], [0], [1], [0, 0, 1, 1], [], []>} : vector<32x64xbf16>, vector<64x64xbf16>, vector<32x64xf32> -> vector<32x64xf32>
    %32 = arith.addf %27, %31 : vector<32x64xf32>
    %33 = vector.extract_strided_slice %13 {offsets = [128, 0], sizes = [32, 64], strides = [1, 1]} : vector<288x64xbf16> to vector<32x64xbf16>
    %c4 = arith.constant 4 : index
    %c0_23 = arith.constant 0 : index
    %c0_24 = arith.constant 0 : index
    %34 = vector.load %arg5[%c4, %c0_23, %c0_24] : memref<9x64x64xbf16, #tpu.memory_space<vmem>>, vector<1x64x64xbf16>
    %35 = vector.shape_cast %34 : vector<1x64x64xbf16> to vector<64x64xbf16>
    %cst_25 = arith.constant dense<0.000000e+00> : vector<32x64xf32>
    %36 = tpu.matmul %33, %35, %cst_25 {dimension_numbers = #tpu.dot_dimension_numbers<[1], [0], [0], [1], [0, 0, 1, 1], [], []>} : vector<32x64xbf16>, vector<64x64xbf16>, vector<32x64xf32> -> vector<32x64xf32>
    %37 = arith.addf %32, %36 : vector<32x64xf32>
    %38 = vector.extract_strided_slice %13 {offsets = [160, 0], sizes = [32, 64], strides = [1, 1]} : vector<288x64xbf16> to vector<32x64xbf16>
    %c5 = arith.constant 5 : index
    %c0_26 = arith.constant 0 : index
    %c0_27 = arith.constant 0 : index
    %39 = vector.load %arg5[%c5, %c0_26, %c0_27] : memref<9x64x64xbf16, #tpu.memory_space<vmem>>, vector<1x64x64xbf16>
    %40 = vector.shape_cast %39 : vector<1x64x64xbf16> to vector<64x64xbf16>
    %cst_28 = arith.constant dense<0.000000e+00> : vector<32x64xf32>
    %41 = tpu.matmul %38, %40, %cst_28 {dimension_numbers = #tpu.dot_dimension_numbers<[1], [0], [0], [1], [0, 0, 1, 1], [], []>} : vector<32x64xbf16>, vector<64x64xbf16>, vector<32x64xf32> -> vector<32x64xf32>
    %42 = arith.addf %37, %41 : vector<32x64xf32>
    %43 = vector.extract_strided_slice %13 {offsets = [192, 0], sizes = [32, 64], strides = [1, 1]} : vector<288x64xbf16> to vector<32x64xbf16>
    %c6 = arith.constant 6 : index
    %c0_29 = arith.constant 0 : index
    %c0_30 = arith.constant 0 : index
    %44 = vector.load %arg5[%c6, %c0_29, %c0_30] : memref<9x64x64xbf16, #tpu.memory_space<vmem>>, vector<1x64x64xbf16>
    %45 = vector.shape_cast %44 : vector<1x64x64xbf16> to vector<64x64xbf16>
    %cst_31 = arith.constant dense<0.000000e+00> : vector<32x64xf32>
    %46 = tpu.matmul %43, %45, %cst_31 {dimension_numbers = #tpu.dot_dimension_numbers<[1], [0], [0], [1], [0, 0, 1, 1], [], []>} : vector<32x64xbf16>, vector<64x64xbf16>, vector<32x64xf32> -> vector<32x64xf32>
    %47 = arith.addf %42, %46 : vector<32x64xf32>
    %48 = vector.extract_strided_slice %13 {offsets = [224, 0], sizes = [32, 64], strides = [1, 1]} : vector<288x64xbf16> to vector<32x64xbf16>
    %c7 = arith.constant 7 : index
    %c0_32 = arith.constant 0 : index
    %c0_33 = arith.constant 0 : index
    %49 = vector.load %arg5[%c7, %c0_32, %c0_33] : memref<9x64x64xbf16, #tpu.memory_space<vmem>>, vector<1x64x64xbf16>
    %50 = vector.shape_cast %49 : vector<1x64x64xbf16> to vector<64x64xbf16>
    %cst_34 = arith.constant dense<0.000000e+00> : vector<32x64xf32>
    %51 = tpu.matmul %48, %50, %cst_34 {dimension_numbers = #tpu.dot_dimension_numbers<[1], [0], [0], [1], [0, 0, 1, 1], [], []>} : vector<32x64xbf16>, vector<64x64xbf16>, vector<32x64xf32> -> vector<32x64xf32>
    %52 = arith.addf %47, %51 : vector<32x64xf32>
    %53 = vector.extract_strided_slice %13 {offsets = [256, 0], sizes = [32, 64], strides = [1, 1]} : vector<288x64xbf16> to vector<32x64xbf16>
    %c8 = arith.constant 8 : index
    %c0_35 = arith.constant 0 : index
    %c0_36 = arith.constant 0 : index
    %54 = vector.load %arg5[%c8, %c0_35, %c0_36] : memref<9x64x64xbf16, #tpu.memory_space<vmem>>, vector<1x64x64xbf16>
    %55 = vector.shape_cast %54 : vector<1x64x64xbf16> to vector<64x64xbf16>
    %cst_37 = arith.constant dense<0.000000e+00> : vector<32x64xf32>
    %56 = tpu.matmul %53, %55, %cst_37 {dimension_numbers = #tpu.dot_dimension_numbers<[1], [0], [0], [1], [0, 0, 1, 1], [], []>} : vector<32x64xbf16>, vector<64x64xbf16>, vector<32x64xf32> -> vector<32x64xf32>
    %57 = arith.addf %52, %56 : vector<32x64xf32>
    %c0_38 = arith.constant 0 : index
    %c0_39 = arith.constant 0 : index
    %58 = vector.load %arg6[%c0_38, %c0_39] : memref<1x64xf32, #tpu.memory_space<vmem>>, vector<1x64xf32>
    %59 = vector.broadcast %58 : vector<1x64xf32> to vector<32x64xf32>
    %60 = arith.addf %57, %59 : vector<32x64xf32>
    %cst_40 = arith.constant 0.000000e+00 : f32
    %61 = vector.broadcast %cst_40 : f32 to vector<32x64xf32>
    %62 = arith.maximumf %60, %61 : vector<32x64xf32>
    %63 = arith.truncf %62 : vector<32x64xf32> to vector<32x64xbf16>
    %c0_41 = arith.constant 0 : index
    %c0_42 = arith.constant 0 : index
    %64 = vector.load %arg7[%c0_41, %c0_42] : memref<64x1024xbf16, #tpu.memory_space<vmem>>, vector<64x1024xbf16>
    %cst_43 = arith.constant dense<0.000000e+00> : vector<32x1024xf32>
    %65 = tpu.matmul %63, %64, %cst_43 {dimension_numbers = #tpu.dot_dimension_numbers<[1], [0], [0], [1], [0, 0, 1, 1], [], []>} : vector<32x64xbf16>, vector<64x1024xbf16>, vector<32x1024xf32> -> vector<32x1024xf32>
    %c0_44 = arith.constant 0 : index
    %c0_45 = arith.constant 0 : index
    %66 = vector.load %arg8[%c0_44, %c0_45] : memref<1x1024xf32, #tpu.memory_space<vmem>>, vector<1x1024xf32>
    %67 = vector.broadcast %66 : vector<1x1024xf32> to vector<32x1024xf32>
    %68 = arith.addf %65, %67 : vector<32x1024xf32>
    %69 = arith.addf %68, %1 : vector<32x1024xf32>
    %cst_46 = arith.constant 0.000000e+00 : f32
    %70 = vector.broadcast %cst_46 : f32 to vector<32x1024xf32>
    %71 = arith.maximumf %69, %70 : vector<32x1024xf32>
    %c0_47 = arith.constant 0 : index
    %c0_48 = arith.constant 0 : index
    %c0_49 = arith.constant 0 : index
    %72 = vector.load %arg9[%c0_47, %c0_48, %c0_49] : memref<1x32x1024xf32, #tpu.memory_space<vmem>>, vector<1x32x1024xf32>
    %73 = vector.shape_cast %72 : vector<1x32x1024xf32> to vector<32x1024xf32>
    %74 = vector.shape_cast %71 : vector<32x1024xf32> to vector<1x32x1024xf32>
    tpu.vector_store %arg9[%c0_47, %c0_48, %c0_49], %74 {strides = array<i32>} : memref<1x32x1024xf32, #tpu.memory_space<vmem>>, vector<1x32x1024xf32>,
    return
  }
  func.func @transform_0(%arg0: i32) -> (i32, i32, i32) {
    %c0_i32 = arith.constant 0 : i32
    %c0_i32_0 = arith.constant 0 : i32
    %c0_i32_1 = arith.constant 0 : i32
    return %arg0, %c0_i32, %c0_i32_0 : i32, i32, i32
  }
  func.func @transform_1(%arg0: i32) -> (i32, i32) {
    %c0_i32 = arith.constant 0 : i32
    %c0_i32_0 = arith.constant 0 : i32
    %c0_i32_1 = arith.constant 0 : i32
    return %c0_i32, %c0_i32_0 : i32, i32
  }
  func.func @transform_2(%arg0: i32) -> (i32, i32) {
    %c0_i32 = arith.constant 0 : i32
    %c0_i32_0 = arith.constant 0 : i32
    %c0_i32_1 = arith.constant 0 : i32
    return %c0_i32, %c0_i32_0 : i32, i32
  }
  func.func @transform_3(%arg0: i32) -> (i32, i32) {
    %c0_i32 = arith.constant 0 : i32
    %c0_i32_0 = arith.constant 0 : i32
    %c0_i32_1 = arith.constant 0 : i32
    return %c0_i32, %c0_i32_0 : i32, i32
  }
  func.func @transform_4(%arg0: i32) -> (i32, i32, i32) {
    %c0_i32 = arith.constant 0 : i32
    %c0_i32_0 = arith.constant 0 : i32
    %c0_i32_1 = arith.constant 0 : i32
    %c0_i32_2 = arith.constant 0 : i32
    return %c0_i32, %c0_i32_0, %c0_i32_1 : i32, i32, i32
  }
  func.func @transform_5(%arg0: i32) -> (i32, i32) {
    %c0_i32 = arith.constant 0 : i32
    %c0_i32_0 = arith.constant 0 : i32
    %c0_i32_1 = arith.constant 0 : i32
    return %c0_i32, %c0_i32_0 : i32, i32
  }
  func.func @transform_6(%arg0: i32) -> (i32, i32) {
    %c0_i32 = arith.constant 0 : i32
    %c0_i32_0 = arith.constant 0 : i32
    %c0_i32_1 = arith.constant 0 : i32
    return %c0_i32, %c0_i32_0 : i32, i32
  }
  func.func @transform_7(%arg0: i32) -> (i32, i32) {
    %c0_i32 = arith.constant 0 : i32
    %c0_i32_0 = arith.constant 0 : i32
    %c0_i32_1 = arith.constant 0 : i32
    return %c0_i32, %c0_i32_0 : i32, i32
  }
  func.func @transform_8(%arg0: i32) -> (i32, i32, i32) {
    %c0_i32 = arith.constant 0 : i32
    %c0_i32_0 = arith.constant 0 : i32
    %c0_i32_1 = arith.constant 0 : i32
    return %arg0, %c0_i32, %c0_i32_0 : i32, i32, i32
  }
}

</mosaic_0001>

<llo_original>
// kernel: tile.18
$region0: #{tile.18}
  #allocation0 [shape = 's32[1]{0}', space=sflag, size = 0x4, scoped, tag = 'scoped memory for tile.18']
  %s0 = inlined_call_operand.vmem [shape: f32[8], index: 0, kind: input, shape index: {}]
  %s1 = inlined_call_operand.vmem [shape: f32[8,8], index: 1, kind: output, shape index: {}]
  // Predicated region
  $region2: #{tile.18} parent=0 // pred_check
    _
  $region3: #{tile.18} parent=0 // pred_check_branch
    %3 = sbr.rel (0) target = $region5
  $region4: #{tile.18} parent=0 // pred_region
    _
  $region5: #{tile.18} parent=0 // pred_fallthru
    _
  %v4 = vld [vmem:[%s0] ss:$0 sm:$0xff]
  %5 = vst [vmem:[%s1] sm:$0xff] %v4

// kernel: tile.19
$region0: #{tile.19}
  %s0 = inlined_call_operand.vmem [shape: f32[8,8], index: 0, kind: input, shape index: {}]
  %s1 = inlined_call_operand.vmem [shape: f32[1,64], index: 1, kind: output, shape index: {}]
  $region1: #{tile.19} parent=0
    #allocation0 [shape = 'u8[4096]{0}', space=vmem, size = 0x1000, scoped, tag = 'scoped mem for output reshape']
    %v2 = vld [vmem:[%s0] sm:$0x1]
    %vm3 = vcmask 64512
    %4 = vst.msk [vmem:[#allocation0] sm:$0x1] %vm3, %v2
    %s5 = scalar_lea.vmem %s0, 7
    %v6 = vld [vmem:[%s5] sm:$0x1]
    %7 = vrot.lane.b32.xlu0 %v6, 56
    %v8 = vpop.permute.xlu0 %7
    %vm9 = vcmask 523712
    %10 = vst.msk [vmem:[#allocation0] sm:$0x1] %vm9, %v8
    %s11 = scalar_lea.vmem %s0, 6
    %v12 = vld [vmem:[%s11] sm:$0x1]
    %13 = vrot.lane.b32.xlu0 %v12, 48
    %v14 = vpop.permute.xlu0 %13
    %vm15 = vcmask 458112
    %16 = vst.msk [vmem:[#allocation0] sm:$0x1] %vm15, %v14
    %s17 = scalar_lea.vmem %s0, 5
    %v18 = vld [vmem:[%s17] sm:$0x1]
    %19 = vrot.lane.b32.xlu0 %v18, 40
    %v20 = vpop.permute.xlu0 %19
    %vm21 = vcmask 392512
    %22 = vst.msk [vmem:[#allocation0] sm:$0x1] %vm21, %v20
    %s23 = scalar_lea.vmem %s0, 4
    %v24 = vld [vmem:[%s23] sm:$0x1]
    %25 = vrot.lane.b32.xlu0 %v24, 32
    %v26 = vpop.permute.xlu0 %25
    %vm27 = vcmask 326912
    %28 = vst.msk [vmem:[#allocation0] sm:$0x1] %vm27, %v26
    %s29 = scalar_lea.vmem %s0, 3
    %v30 = vld [vmem:[%s29] sm:$0x1]
    %31 = vrot.lane.b32.xlu0 %v30, 24
    %v32 = vpop.permute.xlu0 %31
    %vm33 = vcmask 261312
    %34 = vst.msk [vmem:[#allocation0] sm:$0x1] %vm33, %v32
    %s35 = scalar_lea.vmem %s0, 2
    %v36 = vld [vmem:[%s35] sm:$0x1]
    %37 = vrot.lane.b32.xlu0 %v36, 16
    %v38 = vpop.permute.xlu0 %37
    %vm39 = vcmask 195712
    %40 = vst.msk [vmem:[#allocation0] sm:$0x1] %vm39, %v38
    %s41 = scalar_lea.vmem %s0, 1
    %v42 = vld [vmem:[%s41] sm:$0x1]
    %43 = vrot.lane.b32.xlu0 %v42, 8
    %v44 = vpop.permute.xlu0 %43
    %vm45 = vcmask 130112
    %46 = vst.msk [vmem:[#allocation0] sm:$0x1] %vm45, %v44
    %s48 = ssub.s32 2, 1
    %v49 = vld [vmem:[#allocation0] sm:%s48]
    %s51 = ssub.s32 2, 1
    %52 = vst [vmem:[%s1] sm:%s51] %v49

// kernel: tile.23
$region0: #{tile.23}
  #allocation0 [shape = 's32[1]{0}', space=sflag, size = 0x4, scoped, tag = 'scoped memory for tile.23']
  %s0 = inlined_call_operand.vmem [shape: f32[128], index: 0, kind: input, shape index: {}]
  %s1 = inlined_call_operand.vmem [shape: f32[8,128], index: 1, kind: output, shape index: {}]
  // Predicated region
  $region2: #{tile.23} parent=0 // pred_check
    _
  $region3: #{tile.23} parent=0 // pred_check_branch
    %3 = sbr.rel (0) target = $region5
  $region4: #{tile.23} parent=0 // pred_region
    _
  $region5: #{tile.23} parent=0 // pred_fallthru
    _
  %v4 = vld [vmem:[%s0] ss:$0 sm:$0xff]
  %5 = vst [vmem:[%s1] sm:$0xff] %v4

// kernel: resnext_bottleneck_forward.1
$region0: #{resnext_bottleneck_forward.1}
  #allocation0 [shape = 'u32[]', space=smem, size = 0x4, offset = 0x4, fixed_abs, tag = 'smem constant byte address 0x4 - core index']
  #allocation1 [shape = 'u32[72,128]{1,0:T(1,128)}', space=vmem, size = 0x9000, scoped, tag = 'internal scratch']
  %s0 = inlined_call_operand.vmem [shape: f32[2,32,1024], index: 0, kind: input, shape index: {}]
  %s1 = inlined_call_operand.vmem [shape: bf16[1024,64], index: 1, kind: input, shape index: {}]
  %s2 = inlined_call_operand.vmem [shape: f32[1,64], index: 2, kind: input, shape index: {}]
  %s3 = inlined_call_operand.vmem [shape: bf16[288,32], index: 3, kind: input, shape index: {}]
  %s4 = inlined_call_operand.vmem [shape: bf16[9,64,64], index: 4, kind: input, shape index: {}]
  %s5 = inlined_call_operand.vmem [shape: f32[1,64], index: 5, kind: input, shape index: {}]
  %s6 = inlined_call_operand.vmem [shape: bf16[64,1024], index: 6, kind: input, shape index: {}]
  %s7 = inlined_call_operand.vmem [shape: f32[1,1024], index: 7, kind: input, shape index: {}]
  %s8 = inlined_call_operand.vmem [shape: f32[2,32,1024], index: 8, kind: output, shape index: {}]
  %s9 = sld [smem:[#allocation0]]
  $region65: #{resnext_bottleneck_forward.1} parent=0
    _
  %s11 = ssub.s32 1, %s9
  %s12 = scalar_select 0, %s11, %s9
  loop: start=0, step=1, limit=4
  $region2: #{resnext_bottleneck_forward.1} parent=0 // loop_pre_header
    _
  $region3: #{resnext_bottleneck_forward.1} parent=0 // loop_header
    %s14 = sphi 0, %s18
    %p15 = scmp.ge.s32.totalorder %s14, 4
    %s24 = sphi 0, %s26
    %s27 = sphi 0, %s24
    %s28 = sphi 0, %s27
    %s44 = sphi 0, %s28
    %s48 = sphi 0, %s48
    %s50 = sphi 0, %s48
    %s51 = sphi 0, %s50
    %s65 = sphi 0, %s51
    %s69 = sphi 0, %s69
    %s71 = sphi 0, %s69
    %s72 = sphi 0, %s71
    %s86 = sphi 0, %s72
    %s90 = sphi 0, %s90
    %s92 = sphi 0, %s90
    %s93 = sphi 0, %s92
    %s107 = sphi 0, %s93
    %s111 = sphi 0, %s111
    %s113 = sphi 0, %s111
    %s114 = sphi 0, %s113
    %s128 = sphi 0, %s114
    %s132 = sphi 0, %s132
    %s134 = sphi 0, %s132
    %s135 = sphi 0, %s134
    %s149 = sphi 0, %s135
    %s153 = sphi 0, %s153
    %s155 = sphi 0, %s153
    %s156 = sphi 0, %s155
    %s170 = sphi 0, %s156
    %s174 = sphi 0, %s174
    %s176 = sphi 0, %s174
    %s177 = sphi 0, %s176
    %s191 = sphi 0, %s177
    %s197 = sphi 0, %s199
    %s200 = sphi 0, %s197
    %s201 = sphi 0, %s200
    %s217 = sphi 0, %s201
  $region4: #{resnext_bottleneck_forward.1} parent=0 // loop_header_branch
    %17 = sbr.rel (%p15) target = $region8
  $region5: #{resnext_bottleneck_forward.1} parent=0 // loop_body
    %s19 = ssub.s32 %s14, 1
    %s20 = ssub.s32 %s14, 2
    %s21 = sadd.s32 %s14, 1
    %s22 = ssub.s32 %s14, %s21
    %p23 = scmp.eq.s32.totalorder %s22, 0
    %s25 = sadd.s32 %s24, 1
    %s26 = scalar_select %p23, %s24, %s25
    %p29 = pneg %p23
    %p30 = scmp.eq.s32.totalorder %s14, 1
    %p31 = por %p29, %p30
    %p32 = scmp.ne.s32.totalorder %s24, %s27
    %p33 = scmp.eq.s32.totalorder %s14, 0
    %p34 = por %p32, %p33
    %p35 = scmp.ne.s32.totalorder %s24, %s27
    %p36 = scmp.eq.s32.totalorder %s19, 1
    %p37 = por %p35, %p36
    %p38 = scmp.ne.s32.totalorder %s27, %s28
    %p39 = scmp.eq.s32.totalorder %s19, 0
    %p40 = por %p38, %p39
    %p41 = scmp.ne.s32.totalorder %s27, %s28
    %p42 = scmp.eq.s32.totalorder %s20, 1
    %p43 = por %p41, %p42
    %p45 = scmp.ne.s32.totalorder %s28, %s44
    %p46 = scmp.eq.s32.totalorder %s20, 0
    %p47 = por %p45, %p46
    %s49 = sadd.s32 %s48, 1
    %p52 = scmp.eq.s32.totalorder %s14, 1
    %p53 = scmp.ne.s32.totalorder %s48, %s50
    %p54 = scmp.eq.s32.totalorder %s14, 0
    %p55 = por %p53, %p54
    %p56 = scmp.ne.s32.totalorder %s48, %s50
    %p57 = scmp.eq.s32.totalorder %s19, 1
    %p58 = por %p56, %p57
    %p59 = scmp.ne.s32.totalorder %s50, %s51
    %p60 = scmp.eq.s32.totalorder %s19, 0
    %p61 = por %p59, %p60
    %p62 = scmp.ne.s32.totalorder %s50, %s51
    %p63 = scmp.eq.s32.totalorder %s20, 1
    %p64 = por %p62, %p63
    %p66 = scmp.ne.s32.totalorder %s51, %s65
    %p67 = scmp.eq.s32.totalorder %s20, 0
    %p68 = por %p66, %p67
    %s70 = sadd.s32 %s69, 1
    %p73 = scmp.eq.s32.totalorder %s14, 1
    %p74 = scmp.ne.s32.totalorder %s69, %s71
    %p75 = scmp.eq.s32.totalorder %s14, 0
    %p76 = por %p74, %p75
    %p77 = scmp.ne.s32.totalorder %s69, %s71
    %p78 = scmp.eq.s32.totalorder %s19, 1
    %p79 = por %p77, %p78
    %p80 = scmp.ne.s32.totalorder %s71, %s72
    %p81 = scmp.eq.s32.totalorder %s19, 0
    %p82 = por %p80, %p81
    %p83 = scmp.ne.s32.totalorder %s71, %s72
    %p84 = scmp.eq.s32.totalorder %s20, 1
    %p85 = por %p83, %p84
    %p87 = scmp.ne.s32.totalorder %s72, %s86
    %p88 = scmp.eq.s32.totalorder %s20, 0
    %p89 = por %p87, %p88
    %s91 = sadd.s32 %s90, 1
    %p94 = scmp.eq.s32.totalorder %s14, 1
    %p95 = scmp.ne.s32.totalorder %s90, %s92
    %p96 = scmp.eq.s32.totalorder %s14, 0
    %p97 = por %p95, %p96
    %p98 = scmp.ne.s32.totalorder %s90, %s92
    %p99 = scmp.eq.s32.totalorder %s19, 1
    %p100 = por %p98, %p99
    %p101 = scmp.ne.s32.totalorder %s92, %s93
    %p102 = scmp.eq.s32.totalorder %s19, 0
    %p103 = por %p101, %p102
    %p104 = scmp.ne.s32.totalorder %s92, %s93
    %p105 = scmp.eq.s32.totalorder %s20, 1
    %p106 = por %p104, %p105
    %p108 = scmp.ne.s32.totalorder %s93, %s107
    %p109 = scmp.eq.s32.totalorder %s20, 0
    %p110 = por %p108, %p109
    %s112 = sadd.s32 %s111, 1
    %p115 = scmp.eq.s32.totalorder %s14, 1
    %p116 = scmp.ne.s32.totalorder %s111, %s113
    %p117 = scmp.eq.s32.totalorder %s14, 0
    %p118 = por %p116, %p117
    %p119 = scmp.ne.s32.totalorder %s111, %s113
    %p120 = scmp.eq.s32.totalorder %s19, 1
    %p121 = por %p119, %p120
    %p122 = scmp.ne.s32.totalorder %s113, %s114
    %p123 = scmp.eq.s32.totalorder %s19, 0
    %p124 = por %p122, %p123
    %p125 = scmp.ne.s32.totalorder %s113, %s114
    %p126 = scmp.eq.s32.totalorder %s20, 1
    %p127 = por %p125, %p126
    %p129 = scmp.ne.s32.totalorder %s114, %s128
    %p130 = scmp.eq.s32.totalorder %s20, 0
    %p131 = por %p129, %p130
    %s133 = sadd.s32 %s132, 1
    %p136 = scmp.eq.s32.totalorder %s14, 1
    %p137 = scmp.ne.s32.totalorder %s132, %s134
    %p138 = scmp.eq.s32.totalorder %s14, 0
    %p139 = por %p137, %p138
    %p140 = scmp.ne.s32.totalorder %s132, %s134
    %p141 = scmp.eq.s32.totalorder %s19, 1
    %p142 = por %p140, %p141
    %p143 = scmp.ne.s32.totalorder %s134, %s135
    %p144 = scmp.eq.s32.totalorder %s19, 0
    %p145 = por %p143, %p144
    %p146 = scmp.ne.s32.totalorder %s134, %s135
    %p147 = scmp.eq.s32.totalorder %s20, 1
    %p148 = por %p146, %p147
    %p150 = scmp.ne.s32.totalorder %s135, %s149
    %p151 = scmp.eq.s32.totalorder %s20, 0
    %p152 = por %p150, %p151
    %s154 = sadd.s32 %s153, 1
    %p157 = scmp.eq.s32.totalorder %s14, 1
    %p158 = scmp.ne.s32.totalorder %s153, %s155
    %p159 = scmp.eq.s32.totalorder %s14, 0
    %p160 = por %p158, %p159
    %p161 = scmp.ne.s32.totalorder %s153, %s155
    %p162 = scmp.eq.s32.totalorder %s19, 1
    %p163 = por %p161, %p162
    %p164 = scmp.ne.s32.totalorder %s155, %s156
    %p165 = scmp.eq.s32.totalorder %s19, 0
    %p166 = por %p164, %p165
    %p167 = scmp.ne.s32.totalorder %s155, %s156
    %p168 = scmp.eq.s32.totalorder %s20, 1
    %p169 = por %p167, %p168
    %p171 = scmp.ne.s32.totalorder %s156, %s170
    %p172 = scmp.eq.s32.totalorder %s20, 0
    %p173 = por %p171, %p172
    %s175 = sadd.s32 %s174, 1
    %p178 = scmp.eq.s32.totalorder %s14, 1
    %p179 = scmp.ne.s32.totalorder %s174, %s176
    %p180 = scmp.eq.s32.totalorder %s14, 0
    %p181 = por %p179, %p180
    %p182 = scmp.ne.s32.totalorder %s174, %s176
    %p183 = scmp.eq.s32.totalorder %s19, 1
    %p184 = por %p182, %p183
    %p185 = scmp.ne.s32.totalorder %s176, %s177
    %p186 = scmp.eq.s32.totalorder %s19, 0
    %p187 = por %p185, %p186
    %p188 = scmp.ne.s32.totalorder %s176, %s177
    %p189 = scmp.eq.s32.totalorder %s20, 1
    %p190 = por %p188, %p189
    %p192 = scmp.ne.s32.totalorder %s177, %s191
    %p193 = scmp.eq.s32.totalorder %s20, 0
    %p194 = por %p192, %p193
    %s195 = ssub.s32 %s14, %s21
    %p196 = scmp.eq.s32.totalorder %s195, 0
    %s198 = sadd.s32 %s197, 1
    %s199 = scalar_select %p196, %s197, %s198
    %p202 = pneg %p196
    %p203 = scmp.eq.s32.totalorder %s14, 1
    %p204 = por %p202, %p203
    %p205 = scmp.ne.s32.totalorder %s197, %s200
    %p206 = scmp.eq.s32.totalorder %s14, 0
    %p207 = por %p205, %p206
    %p208 = scmp.ne.s32.totalorder %s197, %s200
    %p209 = scmp.eq.s32.totalorder %s19, 1
    %p210 = por %p208, %p209
    %p211 = scmp.ne.s32.totalorder %s200, %s201
    %p212 = scmp.eq.s32.totalorder %s19, 0
    %p213 = por %p211, %p212
    %p214 = scmp.ne.s32.totalorder %s200, %s201
    %p215 = scmp.eq.s32.totalorder %s20, 1
    %p216 = por %p214, %p215
    %p218 = scmp.ne.s32.totalorder %s201, %s217
    %p219 = scmp.eq.s32.totalorder %s20, 0
    %p220 = por %p218, %p219
    %p221 = scmp.le.s32.totalorder 1, %s14
    %p222 = scmp.lt.s32.totalorder %s14, 3
    %p223 = pnand %p221, %p222
    %p224 = pneg %p223
    // Predicated region
    $region9: #{resnext_bottleneck_forward.1} parent=5 // pred_check
      _
    $region10: #{resnext_bottleneck_forward.1} parent=5 // pred_check_branch
      %226 = sbr.rel (%p223) target = $region12
    $region11: #{resnext_bottleneck_forward.1} parent=5 // pred_region
      %s227 = ssub.s32 %s14, 1
      // Predicated region
      $region13: #{resnext_bottleneck_forward.1} parent=11 // pred_check
        %p228 = pneg %p61
      $region14: #{resnext_bottleneck_forward.1} parent=11 // pred_check_branch
        %230 = sbr.rel (%p228) target = $region16
      $region15: #{resnext_bottleneck_forward.1} parent=11 // pred_region
        _
      $region16: #{resnext_bottleneck_forward.1} parent=11 // pred_fallthru
        _
      // Predicated region
      $region17: #{resnext_bottleneck_forward.1} parent=11 // pred_check
        %p231 = pneg %p82
      $region18: #{resnext_bottleneck_forward.1} parent=11 // pred_check_branch
        %233 = sbr.rel (%p231) target = $region20
      $region19: #{resnext_bottleneck_forward.1} parent=11 // pred_region
        _
      $region20: #{resnext_bottleneck_forward.1} parent=11 // pred_fallthru
        _
      // Predicated region
      $region21: #{resnext_bottleneck_forward.1} parent=11 // pred_check
        %p234 = pneg %p103
      $region22: #{resnext_bottleneck_forward.1} parent=11 // pred_check_branch
        %236 = sbr.rel (%p234) target = $region24
      $region23: #{resnext_bottleneck_forward.1} parent=11 // pred_region
        _
      $region24: #{resnext_bottleneck_forward.1} parent=11 // pred_fallthru
        _
      // Predicated region
      $region25: #{resnext_bottleneck_forward.1} parent=11 // pred_check
        %p237 = pneg %p124
      $region26: #{resnext_bottleneck_forward.1} parent=11 // pred_check_branch
        %239 = sbr.rel (%p237) target = $region28
      $region27: #{resnext_bottleneck_forward.1} parent=11 // pred_region
        _
      $region28: #{resnext_bottleneck_forward.1} parent=11 // pred_fallthru
        _
      // Predicated region
      $region29: #{resnext_bottleneck_forward.1} parent=11 // pred_check
        %p240 = pneg %p145
      $region30: #{resnext_bottleneck_forward.1} parent=11 // pred_check_branch
        %242 = sbr.rel (%p240) target = $region32
      $region31: #{resnext_bottleneck_forward.1} parent=11 // pred_region
        _
      $region32: #{resnext_bottleneck_forward.1} parent=11 // pred_fallthru
        _
      // Predicated region
      $region33: #{resnext_bottleneck_forward.1} parent=11 // pred_check
        %p243 = pneg %p166
      $region34: #{resnext_bottleneck_forward.1} parent=11 // pred_check_branch
        %245 = sbr.rel (%p243) target = $region36
      $region35: #{resnext_bottleneck_forward.1} parent=11 // pred_region
        _
      $region36: #{resnext_bottleneck_forward.1} parent=11 // pred_fallthru
        _
      // Predicated region
      $region37: #{resnext_bottleneck_forward.1} parent=11 // pred_check
        %p246 = pneg %p187
      $region38: #{resnext_bottleneck_forward.1} parent=11 // pred_check_branch
        %248 = sbr.rel (%p246) target = $region40
      $region39: #{resnext_bottleneck_forward.1} parent=11 // pred_region
        _
      $region40: #{resnext_bottleneck_forward.1} parent=11 // pred_fallthru
        _
    $region12: #{resnext_bottleneck_forward.1} parent=5 // pred_fallthru
      _
    %p249 = scmp.lt.s32.totalorder %s14, 2
    // Predicated region
    $region41: #{resnext_bottleneck_forward.1} parent=5 // pred_check
      %p250 = pneg %p249
    $region42: #{resnext_bottleneck_forward.1} parent=5 // pred_check_branch
      %252 = sbr.rel (%p250) target = $region44
    $region43: #{resnext_bottleneck_forward.1} parent=5 // pred_region
      // Predicated region
      $region45: #{resnext_bottleneck_forward.1} parent=43 // pred_check
        %p253 = pneg %p34
      $region46: #{resnext_bottleneck_forward.1} parent=43 // pred_check_branch
        %255 = sbr.rel (%p253) target = $region48
      $region47: #{resnext_bottleneck_forward.1} parent=43 // pred_region
        %p256 = scmp.lt.s32.totalorder %s14, 1
        %s257 = scalar_select %p256, %s14, 1
        %s258 = smul.addr %s257, 32
        %s259 = smul.addr %s258, 8
        %s260 = scalar_lea.vmem %s0, %s259
      $region48: #{resnext_bottleneck_forward.1} parent=43 // pred_fallthru
        _
    $region44: #{resnext_bottleneck_forward.1} parent=5 // pred_fallthru
      _
    %p261 = scmp.le.s32.totalorder 1, %s14
    %p262 = scmp.lt.s32.totalorder %s14, 3
    %p263 = pnand %p261, %p262
    %p264 = pneg %p263
    // Predicated region
    $region49: #{resnext_bottleneck_forward.1} parent=5 // pred_check
      _
    $region50: #{resnext_bottleneck_forward.1} parent=5 // pred_check_branch
      %266 = sbr.rel (%p263) target = $region52
    $region51: #{resnext_bottleneck_forward.1} parent=5 // pred_region
      %s267 = ssub.s32 %s14, 1
      %p268 = scmp.lt.s32.totalorder %s19, 1
      %s269 = scalar_select %p268, %s19, 1
      %s270 = smul.addr %s269, 32
      %s271 = smul.addr %s270, 8
      %s272 = scalar_lea.vmem %s0, %s271
      %p273 = pneg %p40
      %p274 = pneg %p37
      %p275 = pneg %p61
      %p276 = pneg %p58
      %p277 = pneg %p82
      %p278 = pneg %p79
      %p279 = pneg %p103
      %p280 = pneg %p100
      %p281 = pneg %p124
      %p282 = pneg %p121
      %p283 = pneg %p145
      %p284 = pneg %p142
      %p285 = pneg %p166
      %p286 = pneg %p163
      %p287 = pneg %p187
      %p288 = pneg %p184
      %p289 = pneg %p213
      %p290 = pneg %p210
      %p291 = scmp.lt.s32.totalorder %s19, 1
      %s292 = scalar_select %p291, %s19, 1
      %s293 = smul.addr %s292, 32
      %s294 = smul.addr %s293, 8
      %s295 = scalar_lea.vmem %s8, %s294
      %p296 = scmp.lt.s32.totalorder %s19, 1
      %s297 = scalar_select %p296, %s19, 1
      %s298 = smul.addr %s297, 32
      %s299 = smul.addr %s298, 8
      %s300 = scalar_lea.vmem %s0, %s299
      %p301 = scmp.lt.s32.totalorder %s19, 1
      %s302 = scalar_select %p301, %s19, 1
      %s303 = smul.addr %s302, 32
      %s304 = smul.addr %s303, 8
      %s305 = scalar_lea.vmem %s8, %s304
      %v307 = vld [vmem:[%s300] sm:$0xff]
      %v308 = vld [vmem:[%s300 + $0x8] sm:$0xff]
      %v309 = vld [vmem:[%s300 + $0x10] sm:$0xff]
      %v310 = vld [vmem:[%s300 + $0x18] sm:$0xff]
      %v311 = vld [vmem:[%s300 + $0x20] sm:$0xff]
      %v312 = vld [vmem:[%s300 + $0x28] sm:$0xff]
      %v313 = vld [vmem:[%s300 + $0x30] sm:$0xff]
      %v314 = vld [vmem:[%s300 + $0x38] sm:$0xff]
      %v315 = vld [vmem:[%s300 + $0x40] sm:$0xff]
      %v316 = vld [vmem:[%s300 + $0x48] sm:$0xff]
      %v317 = vld [vmem:[%s300 + $0x50] sm:$0xff]
      %v318 = vld [vmem:[%s300 + $0x58] sm:$0xff]
      %v319 = vld [vmem:[%s300 + $0x60] sm:$0xff]
      %v320 = vld [vmem:[%s300 + $0x68] sm:$0xff]
      %v321 = vld [vmem:[%s300 + $0x70] sm:$0xff]
      %v322 = vld [vmem:[%s300 + $0x78] sm:$0xff]
      %v323 = vld [vmem:[%s300 + $0x80] sm:$0xff]
      %v324 = vld [vmem:[%s300 + $0x88] sm:$0xff]
      %v325 = vld [vmem:[%s300 + $0x90] sm:$0xff]
      %v326 = vld [vmem:[%s300 + $0x98] sm:$0xff]
      %v327 = vld [vmem:[%s300 + $0xa0] sm:$0xff]
      %v328 = vld [vmem:[%s300 + $0xa8] sm:$0xff]
      %v329 = vld [vmem:[%s300 + $0xb0] sm:$0xff]
      %v330 = vld [vmem:[%s300 + $0xb8] sm:$0xff]
      %v331 = vld [vmem:[%s300 + $0xc0] sm:$0xff]
      %v332 = vld [vmem:[%s300 + $0xc8] sm:$0xff]
      %v333 = vld [vmem:[%s300 + $0xd0] sm:$0xff]
      %v334 = vld [vmem:[%s300 + $0xd8] sm:$0xff]
      %v335 = vld [vmem:[%s300 + $0xe0] sm:$0xff]
      %v336 = vld [vmem:[%s300 + $0xe8] sm:$0xff]
      %v337 = vld [vmem:[%s300 + $0xf0] sm:$0xff]
      %v338 = vld [vmem:[%s300 + $0xf8] sm:$0xff]
      %v339 = vpack.c.bf16 %v315, %v307
      %v340 = vpack.c.bf16 %v316, %v308
      %v341 = vpack.c.bf16 %v317, %v309
      %v342 = vpack.c.bf16 %v318, %v310
      %v343 = vpack.c.bf16 %v319, %v311
      %v344 = vpack.c.bf16 %v320, %v312
      %v345 = vpack.c.bf16 %v321, %v313
      %v346 = vpack.c.bf16 %v322, %v314
      %v347 = vpack.c.bf16 %v331, %v323
      %v348 = vpack.c.bf16 %v332, %v324
      %v349 = vpack.c.bf16 %v333, %v325
      %v350 = vpack.c.bf16 %v334, %v326
      %v351 = vpack.c.bf16 %v335, %v327
      %v352 = vpack.c.bf16 %v336, %v328
      %v353 = vpack.c.bf16 %v337, %v329
      %v354 = vpack.c.bf16 %v338, %v330
      %v355 = vld [vmem:[%s1] sm:$0xf]
      %v356 = vld [vmem:[%s1 + $0x4] sm:$0xf]
      %v357 = vld [vmem:[%s1 + $0x8] sm:$0xf]
      %v358 = vld [vmem:[%s1 + $0xc] sm:$0xf]
      %v359 = vld [vmem:[%s1 + $0x10] sm:$0xf]
      %v360 = vld [vmem:[%s1 + $0x14] sm:$0xf]
      %v361 = vld [vmem:[%s1 + $0x18] sm:$0xf]
      %v362 = vld [vmem:[%s1 + $0x1c] sm:$0xf]
      %v363 = vld [vmem:[%s1 + $0x20] sm:$0xf]
      %v364 = vld [vmem:[%s1 + $0x24] sm:$0xf]
      %v365 = vld [vmem:[%s1 + $0x28] sm:$0xf]
      %v366 = vld [vmem:[%s1 + $0x2c] sm:$0xf]
      %v367 = vld [vmem:[%s1 + $0x30] sm:$0xf]
      %v368 = vld [vmem:[%s1 + $0x34] sm:$0xf]
      %v369 = vld [vmem:[%s1 + $0x38] sm:$0xf]
      %v370 = vld [vmem:[%s1 + $0x3c] sm:$0xf]
      %v371 = vld [vmem:[%s1 + $0x40] sm:$0xf]
      %v372 = vld [vmem:[%s1 + $0x44] sm:$0xf]
      %v373 = vld [vmem:[%s1 + $0x48] sm:$0xf]
      %v374 = vld [vmem:[%s1 + $0x4c] sm:$0xf]
      %v375 = vld [vmem:[%s1 + $0x50] sm:$0xf]
      %v376 = vld [vmem:[%s1 + $0x54] sm:$0xf]
      %v377 = vld [vmem:[%s1 + $0x58] sm:$0xf]
      %v378 = vld [vmem:[%s1 + $0x5c] sm:$0xf]
      %v379 = vld [vmem:[%s1 + $0x60] sm:$0xf]
      %v380 = vld [vmem:[%s1 + $0x64] sm:$0xf]
      %v381 = vld [vmem:[%s1 + $0x68] sm:$0xf]
      %v382 = vld [vmem:[%s1 + $0x6c] sm:$0xf]
      %v383 = vld [vmem:[%s1 + $0x70] sm:$0xf]
      %v384 = vld [vmem:[%s1 + $0x74] sm:$0xf]
      %v385 = vld [vmem:[%s1 + $0x78] sm:$0xf]
      %v386 = vld [vmem:[%s1 + $0x7c] sm:$0xf]
      %v387 = vld [vmem:[%s1 + $0x80] sm:$0xf]
      %v388 = vld [vmem:[%s1 + $0x84] sm:$0xf]
      %v389 = vld [vmem:[%s1 + $0x88] sm:$0xf]
      %v390 = vld [vmem:[%s1 + $0x8c] sm:$0xf]
      %v391 = vld [vmem:[%s1 + $0x90] sm:$0xf]
      %v392 = vld [vmem:[%s1 + $0x94] sm:$0xf]
      %v393 = vld [vmem:[%s1 + $0x98] sm:$0xf]
      %v394 = vld [vmem:[%s1 + $0x9c] sm:$0xf]
      %v395 = vld [vmem:[%s1 + $0xa0] sm:$0xf]
      %v396 = vld [vmem:[%s1 + $0xa4] sm:$0xf]
      %v397 = vld [vmem:[%s1 + $0xa8] sm:$0xf]
      %v398 = vld [vmem:[%s1 + $0xac] sm:$0xf]
      %v399 = vld [vmem:[%s1 + $0xb0] sm:$0xf]
      %v400 = vld [vmem:[%s1 + $0xb4] sm:$0xf]
      %v401 = vld [vmem:[%s1 + $0xb8] sm:$0xf]
      %v402 = vld [vmem:[%s1 + $0xbc] sm:$0xf]
      %v403 = vld [vmem:[%s1 + $0xc0] sm:$0xf]
      %v404 = vld [vmem:[%s1 + $0xc4] sm:$0xf]
      %v405 = vld [vmem:[%s1 + $0xc8] sm:$0xf]
      %v406 = vld [vmem:[%s1 + $0xcc] sm:$0xf]
      %v407 = vld [vmem:[%s1 + $0xd0] sm:$0xf]
      %v408 = vld [vmem:[%s1 + $0xd4] sm:$0xf]
      %v409 = vld [vmem:[%s1 + $0xd8] sm:$0xf]
      %v410 = vld [vmem:[%s1 + $0xdc] sm:$0xf]
      %v411 = vld [vmem:[%s1 + $0xe0] sm:$0xf]
      %v412 = vld [vmem:[%s1 + $0xe4] sm:$0xf]
      %v413 = vld [vmem:[%s1 + $0xe8] sm:$0xf]
      %v414 = vld [vmem:[%s1 + $0xec] sm:$0xf]
      %v415 = vld [vmem:[%s1 + $0xf0] sm:$0xf]
      %v416 = vld [vmem:[%s1 + $0xf4] sm:$0xf]
      %v417 = vld [vmem:[%s1 + $0xf8] sm:$0xf]
      %v418 = vld [vmem:[%s1 + $0xfc] sm:$0xf]
      %v419 = vld [vmem:[%s1 + $0x100] sm:$0xf]
      %v420 = vld [vmem:[%s1 + $0x104] sm:$0xf]
      %v421 = vld [vmem:[%s1 + $0x108] sm:$0xf]
      %v422 = vld [vmem:[%s1 + $0x10c] sm:$0xf]
      %v423 = vld [vmem:[%s1 + $0x110] sm:$0xf]
      %v424 = vld [vmem:[%s1 + $0x114] sm:$0xf]
      %v425 = vld [vmem:[%s1 + $0x118] sm:$0xf]
      %v426 = vld [vmem:[%s1 + $0x11c] sm:$0xf]
      %v427 = vld [vmem:[%s1 + $0x120] sm:$0xf]
      %v428 = vld [vmem:[%s1 + $0x124] sm:$0xf]
      %v429 = vld [vmem:[%s1 + $0x128] sm:$0xf]
      %v430 = vld [vmem:[%s1 + $0x12c] sm:$0xf]
      %v431 = vld [vmem:[%s1 + $0x130] sm:$0xf]
      %v432 = vld [vmem:[%s1 + $0x134] sm:$0xf]
      %v433 = vld [vmem:[%s1 + $0x138] sm:$0xf]
      %v434 = vld [vmem:[%s1 + $0x13c] sm:$0xf]
      %v435 = vld [vmem:[%s1 + $0x140] sm:$0xf]
      %v436 = vld [vmem:[%s1 + $0x144] sm:$0xf]
      %v437 = vld [vmem:[%s1 + $0x148] sm:$0xf]
      %v438 = vld [vmem:[%s1 + $0x14c] sm:$0xf]
      %v439 = vld [vmem:[%s1 + $0x150] sm:$0xf]
      %v440 = vld [vmem:[%s1 + $0x154] sm:$0xf]
      %v441 = vld [vmem:[%s1 + $0x158] sm:$0xf]
      %v442 = vld [vmem:[%s1 + $0x15c] sm:$0xf]
      %v443 = vld [vmem:[%s1 + $0x160] sm:$0xf]
      %v444 = vld [vmem:[%s1 + $0x164] sm:$0xf]
      %v445 = vld [vmem:[%s1 + $0x168] sm:$0xf]
      %v446 = vld [vmem:[%s1 + $0x16c] sm:$0xf]
      %v447 = vld [vmem:[%s1 + $0x170] sm:$0xf]
      %v448 = vld [vmem:[%s1 + $0x174] sm:$0xf]
      %v449 = vld [vmem:[%s1 + $0x178] sm:$0xf]
      %v450 = vld [vmem:[%s1 + $0x17c] sm:$0xf]
      %v451 = vld [vmem:[%s1 + $0x180] sm:$0xf]
      %v452 = vld [vmem:[%s1 + $0x184] sm:$0xf]
      %v453 = vld [vmem:[%s1 + $0x188] sm:$0xf]
      %v454 = vld [vmem:[%s1 + $0x18c] sm:$0xf]
      %v455 = vld [vmem:[%s1 + $0x190] sm:$0xf]
      %v456 = vld [vmem:[%s1 + $0x194] sm:$0xf]
      %v457 = vld [vmem:[%s1 + $0x198] sm:$0xf]
      %v458 = vld [vmem:[%s1 + $0x19c] sm:$0xf]
      %v459 = vld [vmem:[%s1 + $0x1a0] sm:$0xf]
      %v460 = vld [vmem:[%s1 + $0x1a4] sm:$0xf]
      %v461 = vld [vmem:[%s1 + $0x1a8] sm:$0xf]
      %v462 = vld [vmem:[%s1 + $0x1ac] sm:$0xf]
      %v463 = vld [vmem:[%s1 + $0x1b0] sm:$0xf]
      %v464 = vld [vmem:[%s1 + $0x1b4] sm:$0xf]
      %v465 = vld [vmem:[%s1 + $0x1b8] sm:$0xf]
      %v466 = vld [vmem:[%s1 + $0x1bc] sm:$0xf]
      %v467 = vld [vmem:[%s1 + $0x1c0] sm:$0xf]
      %v468 = vld [vmem:[%s1 + $0x1c4] sm:$0xf]
      %v469 = vld [vmem:[%s1 + $0x1c8] sm:$0xf]
      %v470 = vld [vmem:[%s1 + $0x1cc] sm:$0xf]
      %v471 = vld [vmem:[%s1 + $0x1d0] sm:$0xf]
      %v472 = vld [vmem:[%s1 + $0x1d4] sm:$0xf]
      %v473 = vld [vmem:[%s1 + $0x1d8] sm:$0xf]
      %v474 = vld [vmem:[%s1 + $0x1dc] sm:$0xf]
      %v475 = vld [vmem:[%s1 + $0x1e0] sm:$0xf]
      %v476 = vld [vmem:[%s1 + $0x1e4] sm:$0xf]
      %v477 = vld [vmem:[%s1 + $0x1e8] sm:$0xf]
      %v478 = vld [vmem:[%s1 + $0x1ec] sm:$0xf]
      %v479 = vld [vmem:[%s1 + $0x1f0] sm:$0xf]
      %v480 = vld [vmem:[%s1 + $0x1f4] sm:$0xf]
      %v481 = vld [vmem:[%s1 + $0x1f8] sm:$0xf]
      %v482 = vld [vmem:[%s1 + $0x1fc] sm:$0xf]
      %v483 = vld [vmem:[%s2] sm:$0x1]
      %v485 = vperm.slane %v483, 0
      %v615 = vunpack.c.l.b16 %v355
      %v616 = vunpack.c.l.b16 %v356
      %v617 = vunpack.c.l.b16 %v357
      %v618 = vunpack.c.l.b16 %v358
      %v619 = vunpack.c.l.b16 %v359
      %v620 = vunpack.c.l.b16 %v360
      %v621 = vunpack.c.l.b16 %v361
      %v622 = vunpack.c.l.b16 %v362
      %v623 = vunpack.c.l.b16 %v363
      %v624 = vunpack.c.l.b16 %v364
      %v625 = vunpack.c.l.b16 %v365
      %v626 = vunpack.c.l.b16 %v366
      %v627 = vunpack.c.l.b16 %v367
      %v628 = vunpack.c.l.b16 %v368
      %v629 = vunpack.c.l.b16 %v369
      %v630 = vunpack.c.l.b16 %v370
      %v631 = vunpack.c.l.b16 %v371
      %v632 = vunpack.c.l.b16 %v372
      %v633 = vunpack.c.l.b16 %v373
      %v634 = vunpack.c.l.b16 %v374
      %v635 = vunpack.c.l.b16 %v375
      %v636 = vunpack.c.l.b16 %v376
      %v637 = vunpack.c.l.b16 %v377
      %v638 = vunpack.c.l.b16 %v378
      %v639 = vunpack.c.l.b16 %v379
      %v640 = vunpack.c.l.b16 %v380
      %v641 = vunpack.c.l.b16 %v381
      %v642 = vunpack.c.l.b16 %v382
      %v643 = vunpack.c.l.b16 %v383
      %v644 = vunpack.c.l.b16 %v384
      %v645 = vunpack.c.l.b16 %v385
      %v646 = vunpack.c.l.b16 %v386
      %v647 = vunpack.c.l.b16 %v387
      %v648 = vunpack.c.l.b16 %v388
      %v649 = vunpack.c.l.b16 %v389
      %v650 = vunpack.c.l.b16 %v390
      %v651 = vunpack.c.l.b16 %v391
      %v652 = vunpack.c.l.b16 %v392
      %v653 = vunpack.c.l.b16 %v393
      %v654 = vunpack.c.l.b16 %v394
      %v655 = vunpack.c.l.b16 %v395
      %v656 = vunpack.c.l.b16 %v396
      %v657 = vunpack.c.l.b16 %v397
      %v658 = vunpack.c.l.b16 %v398
      %v659 = vunpack.c.l.b16 %v399
      %v660 = vunpack.c.l.b16 %v400
      %v661 = vunpack.c.l.b16 %v401
      %v662 = vunpack.c.l.b16 %v402
      %v663 = vunpack.c.l.b16 %v403
      %v664 = vunpack.c.l.b16 %v404
      %v665 = vunpack.c.l.b16 %v405
      %v666 = vunpack.c.l.b16 %v406
      %v667 = vunpack.c.l.b16 %v407
      %v668 = vunpack.c.l.b16 %v408
      %v669 = vunpack.c.l.b16 %v409
      %v670 = vunpack.c.l.b16 %v410
      %v671 = vunpack.c.l.b16 %v411
      %v672 = vunpack.c.l.b16 %v412
      %v673 = vunpack.c.l.b16 %v413
      %v674 = vunpack.c.l.b16 %v414
      %v675 = vunpack.c.l.b16 %v415
      %v676 = vunpack.c.l.b16 %v416
      %v677 = vunpack.c.l.b16 %v417
      %v678 = vunpack.c.l.b16 %v418
      %v679 = vunpack.c.l.b16 %v419
      %v680 = vunpack.c.l.b16 %v420
      %v681 = vunpack.c.l.b16 %v421
      %v682 = vunpack.c.l.b16 %v422
      %v683 = vunpack.c.l.b16 %v423
      %v684 = vunpack.c.l.b16 %v424
      %v685 = vunpack.c.l.b16 %v425
      %v686 = vunpack.c.l.b16 %v426
      %v687 = vunpack.c.l.b16 %v427
      %v688 = vunpack.c.l.b16 %v428
      %v689 = vunpack.c.l.b16 %v429
      %v690 = vunpack.c.l.b16 %v430
      %v691 = vunpack.c.l.b16 %v431
      %v692 = vunpack.c.l.b16 %v432
      %v693 = vunpack.c.l.b16 %v433
      %v694 = vunpack.c.l.b16 %v434
      %v695 = vunpack.c.l.b16 %v435
      %v696 = vunpack.c.l.b16 %v436
      %v697 = vunpack.c.l.b16 %v437
      %v698 = vunpack.c.l.b16 %v438
      %v699 = vunpack.c.l.b16 %v439
      %v700 = vunpack.c.l.b16 %v440
      %v701 = vunpack.c.l.b16 %v441
      %v702 = vunpack.c.l.b16 %v442
      %v703 = vunpack.c.l.b16 %v443
      %v704 = vunpack.c.l.b16 %v444
      %v705 = vunpack.c.l.b16 %v445
      %v706 = vunpack.c.l.b16 %v446
      %v707 = vunpack.c.l.b16 %v447
      %v708 = vunpack.c.l.b16 %v448
      %v709 = vunpack.c.l.b16 %v449
      %v710 = vunpack.c.l.b16 %v450
      %v711 = vunpack.c.l.b16 %v451
      %v712 = vunpack.c.l.b16 %v452
      %v713 = vunpack.c.l.b16 %v453
      %v714 = vunpack.c.l.b16 %v454
      %v715 = vunpack.c.l.b16 %v455
      %v716 = vunpack.c.l.b16 %v456
      %v717 = vunpack.c.l.b16 %v457
      %v718 = vunpack.c.l.b16 %v458
      %v719 = vunpack.c.l.b16 %v459
      %v720 = vunpack.c.l.b16 %v460
      %v721 = vunpack.c.l.b16 %v461
      %v722 = vunpack.c.l.b16 %v462
      %v723 = vunpack.c.l.b16 %v463
      %v724 = vunpack.c.l.b16 %v464
      %v725 = vunpack.c.l.b16 %v465
      %v726 = vunpack.c.l.b16 %v466
      %v727 = vunpack.c.l.b16 %v467
      %v728 = vunpack.c.l.b16 %v468
      %v729 = vunpack.c.l.b16 %v469
      %v730 = vunpack.c.l.b16 %v470
      %v731 = vunpack.c.l.b16 %v471
      %v732 = vunpack.c.l.b16 %v472
      %v733 = vunpack.c.l.b16 %v473
      %v734 = vunpack.c.l.b16 %v474
      %v735 = vunpack.c.l.b16 %v475
      %v736 = vunpack.c.l.b16 %v476
      %v737 = vunpack.c.l.b16 %v477
      %v738 = vunpack.c.l.b16 %v478
      %v739 = vunpack.c.l.b16 %v479
      %v740 = vunpack.c.l.b16 %v480
      %v741 = vunpack.c.l.b16 %v481
      %v742 = vunpack.c.l.b16 %v482
      %v743 = vpack.c.b16 %v616, %v615
      %v744 = vpack.c.b16 %v618, %v617
      %v745 = vpack.c.b16 %v620, %v619
      %v746 = vpack.c.b16 %v622, %v621
      %v747 = vpack.c.b16 %v624, %v623
      %v748 = vpack.c.b16 %v626, %v625
      %v749 = vpack.c.b16 %v628, %v627
      %v750 = vpack.c.b16 %v630, %v629
      %v751 = vpack.c.b16 %v632, %v631
      %v752 = vpack.c.b16 %v634, %v633
      %v753 = vpack.c.b16 %v636, %v635
      %v754 = vpack.c.b16 %v638, %v637
      %v755 = vpack.c.b16 %v640, %v639
      %v756 = vpack.c.b16 %v642, %v641
      %v757 = vpack.c.b16 %v644, %v643
      %v758 = vpack.c.b16 %v646, %v645
      %v759 = vpack.c.b16 %v648, %v647
      %v760 = vpack.c.b16 %v650, %v649
      %v761 = vpack.c.b16 %v652, %v651
      %v762 = vpack.c.b16 %v654, %v653
      %v763 = vpack.c.b16 %v656, %v655
      %v764 = vpack.c.b16 %v658, %v657
      %v765 = vpack.c.b16 %v660, %v659
      %v766 = vpack.c.b16 %v662, %v661
      %v767 = vpack.c.b16 %v664, %v663
      %v768 = vpack.c.b16 %v666, %v665
      %v769 = vpack.c.b16 %v668, %v667
      %v770 = vpack.c.b16 %v670, %v669
      %v771 = vpack.c.b16 %v672, %v671
      %v772 = vpack.c.b16 %v674, %v673
      %v773 = vpack.c.b16 %v676, %v675
      %v774 = vpack.c.b16 %v678, %v677
      %v775 = vpack.c.b16 %v680, %v679
      %v776 = vpack.c.b16 %v682, %v681
      %v777 = vpack.c.b16 %v684, %v683
      %v778 = vpack.c.b16 %v686, %v685
      %v779 = vpack.c.b16 %v688, %v687
      %v780 = vpack.c.b16 %v690, %v689
      %v781 = vpack.c.b16 %v692, %v691
      %v782 = vpack.c.b16 %v694, %v693
      %v783 = vpack.c.b16 %v696, %v695
      %v784 = vpack.c.b16 %v698, %v697
      %v785 = vpack.c.b16 %v700, %v699
      %v786 = vpack.c.b16 %v702, %v701
      %v787 = vpack.c.b16 %v704, %v703
      %v788 = vpack.c.b16 %v706, %v705
      %v789 = vpack.c.b16 %v708, %v707
      %v790 = vpack.c.b16 %v710, %v709
      %v791 = vpack.c.b16 %v712, %v711
      %v792 = vpack.c.b16 %v714, %v713
      %v793 = vpack.c.b16 %v716, %v715
      %v794 = vpack.c.b16 %v718, %v717
      %v795 = vpack.c.b16 %v720, %v719
      %v796 = vpack.c.b16 %v722, %v721
      %v797 = vpack.c.b16 %v724, %v723
      %v798 = vpack.c.b16 %v726, %v725
      %v799 = vpack.c.b16 %v728, %v727
      %v800 = vpack.c.b16 %v730, %v729
      %v801 = vpack.c.b16 %v732, %v731
      %v802 = vpack.c.b16 %v734, %v733
      %v803 = vpack.c.b16 %v736, %v735
      %v804 = vpack.c.b16 %v738, %v737
      %v805 = vpack.c.b16 %v740, %v739
      %v806 = vpack.c.b16 %v742, %v741
      %871 = vmatpush.bf16.msra.mxu0 %v750
      %872 = vmatpush.bf16.msra.mxu0 %v749
      %873 = vmatpush.bf16.msra.mxu0 %v748
      %874 = vmatpush.bf16.msra.mxu0 %v747
      %875 = vmatpush.bf16.msra.mxu0 %v746
      %876 = vmatpush.bf16.msra.mxu0 %v745
      %877 = vmatpush.bf16.msra.mxu0 %v744
      %878 = vmatpush.bf16.msra.mxu0 %v743
      %879 = vmatmul.bf16.gmra.mxu0 %v339
      %v880 = vpop.f32.mrf.mxu0
      %v881 = vadd.f32 %v485, %v880
      %v882 = vpop.f32.mrf.mxu0
      %v883 = vadd.f32 %v485, %v882
      %884 = vmatmul.bf16.gmra.mxu0 %v347
      %v885 = vpop.f32.mrf.mxu0
      %v886 = vadd.f32 %v485, %v885
      %v887 = vpop.f32.mrf.mxu0
      %v888 = vadd.f32 %v485, %v887
      %889 = vdwg.mxu0
      %890 = vmatpush.bf16.msra.mxu0 %v758
      %891 = vmatpush.bf16.msra.mxu0 %v757
      %892 = vmatpush.bf16.msra.mxu0 %v756
      %893 = vmatpush.bf16.msra.mxu0 %v755
      %894 = vmatpush.bf16.msra.mxu0 %v754
      %895 = vmatpush.bf16.msra.mxu0 %v753
      %896 = vmatpush.bf16.msra.mxu0 %v752
      %897 = vmatpush.bf16.msra.mxu0 %v751
      %898 = vmatmul.bf16.gmra.mxu0 %v340
      %v899 = vpop.f32.mrf.mxu0
      %v900 = vadd.f32 %v881, %v899
      %v901 = vpop.f32.mrf.mxu0
      %v902 = vadd.f32 %v883, %v901
      %903 = vmatmul.bf16.gmra.mxu0 %v348
      %v904 = vpop.f32.mrf.mxu0
      %v905 = vadd.f32 %v886, %v904
      %v906 = vpop.f32.mrf.mxu0
      %v907 = vadd.f32 %v888, %v906
      %908 = vdwg.mxu0
      %909 = vmatpush.bf16.msra.mxu0 %v766
      %910 = vmatpush.bf16.msra.mxu0 %v765
      %911 = vmatpush.bf16.msra.mxu0 %v764
      %912 = vmatpush.bf16.msra.mxu0 %v763
      %913 = vmatpush.bf16.msra.mxu0 %v762
      %914 = vmatpush.bf16.msra.mxu0 %v761
      %915 = vmatpush.bf16.msra.mxu0 %v760
      %916 = vmatpush.bf16.msra.mxu0 %v759
      %917 = vmatmul.bf16.gmra.mxu0 %v341
      %v918 = vpop.f32.mrf.mxu0
      %v919 = vadd.f32 %v900, %v918
      %v920 = vpop.f32.mrf.mxu0
      %v921 = vadd.f32 %v902, %v920
      %922 = vmatmul.bf16.gmra.mxu0 %v349
      %v923 = vpop.f32.mrf.mxu0
      %v924 = vadd.f32 %v905, %v923
      %v925 = vpop.f32.mrf.mxu0
      %v926 = vadd.f32 %v907, %v925
      %927 = vdwg.mxu0
      %928 = vmatpush.bf16.msra.mxu0 %v774
      %929 = vmatpush.bf16.msra.mxu0 %v773
      %930 = vmatpush.bf16.msra.mxu0 %v772
      %931 = vmatpush.bf16.msra.mxu0 %v771
      %932 = vmatpush.bf16.msra.mxu0 %v770
      %933 = vmatpush.bf16.msra.mxu0 %v769
      %934 = vmatpush.bf16.msra.mxu0 %v768
      %935 = vmatpush.bf16.msra.mxu0 %v767
      %936 = vmatmul.bf16.gmra.mxu0 %v342
      %v937 = vpop.f32.mrf.mxu0
      %v938 = vadd.f32 %v919, %v937
      %v939 = vpop.f32.mrf.mxu0
      %v940 = vadd.f32 %v921, %v939
      %941 = vmatmul.bf16.gmra.mxu0 %v350
      %v942 = vpop.f32.mrf.mxu0
      %v943 = vadd.f32 %v924, %v942
      %v944 = vpop.f32.mrf.mxu0
      %v945 = vadd.f32 %v926, %v944
      %946 = vdwg.mxu0
      %947 = vmatpush.bf16.msra.mxu0 %v782
      %948 = vmatpush.bf16.msra.mxu0 %v781
      %949 = vmatpush.bf16.msra.mxu0 %v780
      %950 = vmatpush.bf16.msra.mxu0 %v779
      %951 = vmatpush.bf16.msra.mxu0 %v778
      %952 = vmatpush.bf16.msra.mxu0 %v777
      %953 = vmatpush.bf16.msra.mxu0 %v776
      %954 = vmatpush.bf16.msra.mxu0 %v775
      %955 = vmatmul.bf16.gmra.mxu0 %v343
      %v956 = vpop.f32.mrf.mxu0
      %v957 = vadd.f32 %v938, %v956
      %v958 = vpop.f32.mrf.mxu0
      %v959 = vadd.f32 %v940, %v958
      %960 = vmatmul.bf16.gmra.mxu0 %v351
      %v961 = vpop.f32.mrf.mxu0
      %v962 = vadd.f32 %v943, %v961
      %v963 = vpop.f32.mrf.mxu0
      %v964 = vadd.f32 %v945, %v963
      %965 = vdwg.mxu0
      %966 = vmatpush.bf16.msra.mxu0 %v790
      %967 = vmatpush.bf16.msra.mxu0 %v789
      %968 = vmatpush.bf16.msra.mxu0 %v788
      %969 = vmatpush.bf16.msra.mxu0 %v787
      %970 = vmatpush.bf16.msra.mxu0 %v786
      %971 = vmatpush.bf16.msra.mxu0 %v785
      %972 = vmatpush.bf16.msra.mxu0 %v784
      %973 = vmatpush.bf16.msra.mxu0 %v783
      %974 = vmatmul.bf16.gmra.mxu0 %v344
      %v975 = vpop.f32.mrf.mxu0
      %v976 = vadd.f32 %v957, %v975
      %v977 = vpop.f32.mrf.mxu0
      %v978 = vadd.f32 %v959, %v977
      %979 = vmatmul.bf16.gmra.mxu0 %v352
      %v980 = vpop.f32.mrf.mxu0
      %v981 = vadd.f32 %v962, %v980
      %v982 = vpop.f32.mrf.mxu0
      %v983 = vadd.f32 %v964, %v982
      %984 = vdwg.mxu0
      %985 = vmatpush.bf16.msra.mxu0 %v798
      %986 = vmatpush.bf16.msra.mxu0 %v797
      %987 = vmatpush.bf16.msra.mxu0 %v796
      %988 = vmatpush.bf16.msra.mxu0 %v795
      %989 = vmatpush.bf16.msra.mxu0 %v794
      %990 = vmatpush.bf16.msra.mxu0 %v793
      %991 = vmatpush.bf16.msra.mxu0 %v792
      %992 = vmatpush.bf16.msra.mxu0 %v791
      %993 = vmatmul.bf16.gmra.mxu0 %v345
      %v994 = vpop.f32.mrf.mxu0
      %v995 = vadd.f32 %v976, %v994
      %v996 = vpop.f32.mrf.mxu0
      %v997 = vadd.f32 %v978, %v996
      %998 = vmatmul.bf16.gmra.mxu0 %v353
      %v999 = vpop.f32.mrf.mxu0
      %v1000 = vadd.f32 %v981, %v999
      %v1001 = vpop.f32.mrf.mxu0
      %v1002 = vadd.f32 %v983, %v1001
      %1003 = vdwg.mxu0
      %1004 = vmatpush.bf16.msra.mxu0 %v806
      %1005 = vmatpush.bf16.msra.mxu0 %v805
      %1006 = vmatpush.bf16.msra.mxu0 %v804
      %1007 = vmatpush.bf16.msra.mxu0 %v803
      %1008 = vmatpush.bf16.msra.mxu0 %v802
      %1009 = vmatpush.bf16.msra.mxu0 %v801
      %1010 = vmatpush.bf16.msra.mxu0 %v800
      %1011 = vmatpush.bf16.msra.mxu0 %v799
      %1012 = vmatmul.bf16.gmra.mxu0 %v346
      %v1013 = vpop.f32.mrf.mxu0
      %v1014 = vadd.f32 %v995, %v1013
      %v1015 = vpop.f32.mrf.mxu0
      %v1016 = vadd.f32 %v997, %v1015
      %1017 = vmatmul.bf16.gmra.mxu0 %v354
      %v1018 = vpop.f32.mrf.mxu0
      %v1019 = vadd.f32 %v1000, %v1018
      %v1020 = vpop.f32.mrf.mxu0
      %v1021 = vadd.f32 %v1002, %v1020
      %1022 = vdwg.mxu0
      %v1023 = vmax.f32 %v1014, 0.0
      %v1024 = vmax.f32 %v1016, 0.0
      %v1025 = vmax.f32 %v1019, 0.0
      %v1026 = vmax.f32 %v1021, 0.0
      %v1027 = vpack.c.bf16 %v1024, %v1023
      %v1028 = vpack.c.bf16 %v1026, %v1025
      %v1029 = vld [vmem:[%s3] sm:$0xf]
      %v1030 = vld [vmem:[%s3 + $0x4] sm:$0xf]
      %v1031 = vld [vmem:[%s3 + $0x8] sm:$0xf]
      %v1032 = vld [vmem:[%s3 + $0xc] sm:$0xf]
      %v1033 = vld [vmem:[%s3 + $0x10] sm:$0xf]
      %v1034 = vld [vmem:[%s3 + $0x14] sm:$0xf]
      %v1035 = vld [vmem:[%s3 + $0x18] sm:$0xf]
      %v1036 = vld [vmem:[%s3 + $0x1c] sm:$0xf]
      %v1037 = vld [vmem:[%s3 + $0x20] sm:$0xf]
      %v1038 = vld [vmem:[%s3 + $0x24] sm:$0xf]
      %v1039 = vld [vmem:[%s3 + $0x28] sm:$0xf]
      %v1040 = vld [vmem:[%s3 + $0x2c] sm:$0xf]
      %v1041 = vld [vmem:[%s3 + $0x30] sm:$0xf]
      %v1042 = vld [vmem:[%s3 + $0x34] sm:$0xf]
      %v1043 = vld [vmem:[%s3 + $0x38] sm:$0xf]
      %v1044 = vld [vmem:[%s3 + $0x3c] sm:$0xf]
      %v1045 = vld [vmem:[%s3 + $0x40] sm:$0xf]
      %v1046 = vld [vmem:[%s3 + $0x44] sm:$0xf]
      %v1047 = vld [vmem:[%s3 + $0x48] sm:$0xf]
      %v1048 = vld [vmem:[%s3 + $0x4c] sm:$0xf]
      %v1049 = vld [vmem:[%s3 + $0x50] sm:$0xf]
      %v1050 = vld [vmem:[%s3 + $0x54] sm:$0xf]
      %v1051 = vld [vmem:[%s3 + $0x58] sm:$0xf]
      %v1052 = vld [vmem:[%s3 + $0x5c] sm:$0xf]
      %v1053 = vld [vmem:[%s3 + $0x60] sm:$0xf]
      %v1054 = vld [vmem:[%s3 + $0x64] sm:$0xf]
      %v1055 = vld [vmem:[%s3 + $0x68] sm:$0xf]
      %v1056 = vld [vmem:[%s3 + $0x6c] sm:$0xf]
      %v1057 = vld [vmem:[%s3 + $0x70] sm:$0xf]
      %v1058 = vld [vmem:[%s3 + $0x74] sm:$0xf]
      %v1059 = vld [vmem:[%s3 + $0x78] sm:$0xf]
      %v1060 = vld [vmem:[%s3 + $0x7c] sm:$0xf]
      %v1061 = vld [vmem:[%s3 + $0x80] sm:$0xf]
      %v1062 = vld [vmem:[%s3 + $0x84] sm:$0xf]
      %v1063 = vld [vmem:[%s3 + $0x88] sm:$0xf]
      %v1064 = vld [vmem:[%s3 + $0x8c] sm:$0xf]
      %v1101 = vunpack.c.l.b16 %v1029
      %v1102 = vunpack.c.l.b16 %v1030
      %v1103 = vunpack.c.l.b16 %v1031
      %v1104 = vunpack.c.l.b16 %v1032
      %v1105 = vunpack.c.l.b16 %v1033
      %v1106 = vunpack.c.l.b16 %v1034
      %v1107 = vunpack.c.l.b16 %v1035
      %v1108 = vunpack.c.l.b16 %v1036
      %v1109 = vunpack.c.l.b16 %v1037
      %v1110 = vunpack.c.l.b16 %v1038
      %v1111 = vunpack.c.l.b16 %v1039
      %v1112 = vunpack.c.l.b16 %v1040
      %v1113 = vunpack.c.l.b16 %v1041
      %v1114 = vunpack.c.l.b16 %v1042
      %v1115 = vunpack.c.l.b16 %v1043
      %v1116 = vunpack.c.l.b16 %v1044
      %v1117 = vunpack.c.l.b16 %v1045
      %v1118 = vunpack.c.l.b16 %v1046
      %v1119 = vunpack.c.l.b16 %v1047
      %v1120 = vunpack.c.l.b16 %v1048
      %v1121 = vunpack.c.l.b16 %v1049
      %v1122 = vunpack.c.l.b16 %v1050
      %v1123 = vunpack.c.l.b16 %v1051
      %v1124 = vunpack.c.l.b16 %v1052
      %v1125 = vunpack.c.l.b16 %v1053
      %v1126 = vunpack.c.l.b16 %v1054
      %v1127 = vunpack.c.l.b16 %v1055
      %v1128 = vunpack.c.l.b16 %v1056
      %v1129 = vunpack.c.l.b16 %v1057
      %v1130 = vunpack.c.l.b16 %v1058
      %v1131 = vunpack.c.l.b16 %v1059
      %v1132 = vunpack.c.l.b16 %v1060
      %v1133 = vunpack.c.l.b16 %v1061
      %v1134 = vunpack.c.l.b16 %v1062
      %v1135 = vunpack.c.l.b16 %v1063
      %v1136 = vunpack.c.l.b16 %v1064
      %v1137 = vpack.c.b16 %v1102, %v1101
      %v1138 = vpack.c.b16 %v1104, %v1103
      %v1139 = vpack.c.b16 %v1106, %v1105
      %v1140 = vpack.c.b16 %v1108, %v1107
      %v1141 = vpack.c.b16 %v1110, %v1109
      %v1142 = vpack.c.b16 %v1112, %v1111
      %v1143 = vpack.c.b16 %v1114, %v1113
      %v1144 = vpack.c.b16 %v1116, %v1115
      %v1145 = vpack.c.b16 %v1118, %v1117
      %v1146 = vpack.c.b16 %v1120, %v1119
      %v1147 = vpack.c.b16 %v1122, %v1121
      %v1148 = vpack.c.b16 %v1124, %v1123
      %v1149 = vpack.c.b16 %v1126, %v1125
      %v1150 = vpack.c.b16 %v1128, %v1127
      %v1151 = vpack.c.b16 %v1130, %v1129
      %v1152 = vpack.c.b16 %v1132, %v1131
      %v1153 = vpack.c.b16 %v1134, %v1133
      %v1154 = vpack.c.b16 %v1136, %v1135
      %vm1155 = vcmask 261120
      %v1157 = vsel %vm1155, %v1137, 0
      %v1160 = vsel %vm1155, %v1138, 0
      %v1163 = vsel %vm1155, %v1139, 0
      %v1166 = vsel %vm1155, %v1140, 0
      %v1169 = vsel %vm1155, %v1141, 0
      %v1172 = vsel %vm1155, %v1142, 0
      %v1175 = vsel %vm1155, %v1143, 0
      %v1178 = vsel %vm1155, %v1144, 0
      %v1181 = vsel %vm1155, %v1145, 0
      %v1184 = vsel %vm1155, %v1146, 0
      %v1187 = vsel %vm1155, %v1147, 0
      %v1190 = vsel %vm1155, %v1148, 0
      %v1193 = vsel %vm1155, %v1149, 0
      %v1196 = vsel %vm1155, %v1150, 0
      %v1199 = vsel %vm1155, %v1151, 0
      %v1202 = vsel %vm1155, %v1152, 0
      %v1205 = vsel %vm1155, %v1153, 0
      %v1208 = vsel %vm1155, %v1154, 0
      %1210 = vmatpush.bf16.msra.mxu0 0
      %1211 = vmatpush.bf16.msra.mxu0 0
      %1212 = vmatpush.bf16.msra.mxu0 0
      %1213 = vmatpush.bf16.msra.mxu0 0
      %1214 = vmatpush.bf16.msra.mxu0 0
      %1215 = vmatpush.bf16.msra.mxu0 0
      %1216 = vmatpush.bf16.msra.mxu0 %v1028
      %1217 = vmatpush.bf16.msra.mxu0 %v1027
      %1218 = vmatmul.bf16.gmra.mxu0 %v1157
      %v1219 = vpop.f32.mrf.mxu0
      %v1220 = vadd.f32 0.0, %v1219
      %v1221 = vpop.f32.mrf.mxu0
      %v1222 = vadd.f32 0.0, %v1221
      %1223 = vmatmul.bf16.gmra.mxu0 %v1160
      %v1224 = vpop.f32.mrf.mxu0
      %v1225 = vadd.f32 0.0, %v1224
      %v1226 = vpop.f32.mrf.mxu0
      %v1227 = vadd.f32 0.0, %v1226
      %1228 = vmatmul.bf16.gmra.mxu0 %v1163
      %v1229 = vpop.f32.mrf.mxu0
      %v1230 = vadd.f32 0.0, %v1229
      %v1231 = vpop.f32.mrf.mxu0
      %v1232 = vadd.f32 0.0, %v1231
      %1233 = vmatmul.bf16.gmra.mxu0 %v1166
      %v1234 = vpop.f32.mrf.mxu0
      %v1235 = vadd.f32 0.0, %v1234
      %v1236 = vpop.f32.mrf.mxu0
      %v1237 = vadd.f32 0.0, %v1236
      %1238 = vmatmul.bf16.gmra.mxu0 %v1169
      %v1239 = vpop.f32.mrf.mxu0
      %v1240 = vadd.f32 0.0, %v1239
      %v1241 = vpop.f32.mrf.mxu0
      %v1242 = vadd.f32 0.0, %v1241
      %1243 = vmatmul.bf16.gmra.mxu0 %v1172
      %v1244 = vpop.f32.mrf.mxu0
      %v1245 = vadd.f32 0.0, %v1244
      %v1246 = vpop.f32.mrf.mxu0
      %v1247 = vadd.f32 0.0, %v1246
      %1248 = vmatmul.bf16.gmra.mxu0 %v1175
      %v1249 = vpop.f32.mrf.mxu0
      %v1250 = vadd.f32 0.0, %v1249
      %v1251 = vpop.f32.mrf.mxu0
      %v1252 = vadd.f32 0.0, %v1251
      %1253 = vmatmul.bf16.gmra.mxu0 %v1178
      %v1254 = vpop.f32.mrf.mxu0
      %v1255 = vadd.f32 0.0, %v1254
      %v1256 = vpop.f32.mrf.mxu0
      %v1257 = vadd.f32 0.0, %v1256
      %1258 = vmatmul.bf16.gmra.mxu0 %v1181
      %v1259 = vpop.f32.mrf.mxu0
      %v1260 = vadd.f32 0.0, %v1259
      %v1261 = vpop.f32.mrf.mxu0
      %v1262 = vadd.f32 0.0, %v1261
      %1263 = vmatmul.bf16.gmra.mxu0 %v1184
      %v1264 = vpop.f32.mrf.mxu0
      %v1265 = vadd.f32 0.0, %v1264
      %v1266 = vpop.f32.mrf.mxu0
      %v1267 = vadd.f32 0.0, %v1266
      %1268 = vmatmul.bf16.gmra.mxu0 %v1187
      %v1269 = vpop.f32.mrf.mxu0
      %v1270 = vadd.f32 0.0, %v1269
      %v1271 = vpop.f32.mrf.mxu0
      %v1272 = vadd.f32 0.0, %v1271
      %1273 = vmatmul.bf16.gmra.mxu0 %v1190
      %v1274 = vpop.f32.mrf.mxu0
      %v1275 = vadd.f32 0.0, %v1274
      %v1276 = vpop.f32.mrf.mxu0
      %v1277 = vadd.f32 0.0, %v1276
      %1278 = vmatmul.bf16.gmra.mxu0 %v1193
      %v1279 = vpop.f32.mrf.mxu0
      %v1280 = vadd.f32 0.0, %v1279
      %v1281 = vpop.f32.mrf.mxu0
      %v1282 = vadd.f32 0.0, %v1281
      %1283 = vmatmul.bf16.gmra.mxu0 %v1196
      %v1284 = vpop.f32.mrf.mxu0
      %v1285 = vadd.f32 0.0, %v1284
      %v1286 = vpop.f32.mrf.mxu0
      %v1287 = vadd.f32 0.0, %v1286
      %1288 = vmatmul.bf16.gmra.mxu0 %v1199
      %v1289 = vpop.f32.mrf.mxu0
      %v1290 = vadd.f32 0.0, %v1289
      %v1291 = vpop.f32.mrf.mxu0
      %v1292 = vadd.f32 0.0, %v1291
      %1293 = vmatmul.bf16.gmra.mxu0 %v1202
      %v1294 = vpop.f32.mrf.mxu0
      %v1295 = vadd.f32 0.0, %v1294
      %v1296 = vpop.f32.mrf.mxu0
      %v1297 = vadd.f32 0.0, %v1296
      %1298 = vmatmul.bf16.gmra.mxu0 %v1205
      %v1299 = vpop.f32.mrf.mxu0
      %v1300 = vadd.f32 0.0, %v1299
      %v1301 = vpop.f32.mrf.mxu0
      %v1302 = vadd.f32 0.0, %v1301
      %1303 = vmatmul.bf16.gmra.mxu0 %v1208
      %v1304 = vpop.f32.mrf.mxu0
      %v1305 = vadd.f32 0.0, %v1304
      %v1306 = vpop.f32.mrf.mxu0
      %v1307 = vadd.f32 0.0, %v1306
      %1308 = vdwg.mxu0
      %v1309 = vpack.c.bf16 %v1220, %v1220
      %v1310 = vpack.c.bf16 %v1222, %v1222
      %v1311 = vpack.c.bf16 %v1225, %v1225
      %v1312 = vpack.c.bf16 %v1227, %v1227
      %v1313 = vpack.c.bf16 %v1230, %v1230
      %v1314 = vpack.c.bf16 %v1232, %v1232
      %v1315 = vpack.c.bf16 %v1235, %v1235
      %v1316 = vpack.c.bf16 %v1237, %v1237
      %v1317 = vpack.c.bf16 %v1240, %v1240
      %v1318 = vpack.c.bf16 %v1242, %v1242
      %v1319 = vpack.c.bf16 %v1245, %v1245
      %v1320 = vpack.c.bf16 %v1247, %v1247
      %v1321 = vpack.c.bf16 %v1250, %v1250
      %v1322 = vpack.c.bf16 %v1252, %v1252
      %v1323 = vpack.c.bf16 %v1255, %v1255
      %v1324 = vpack.c.bf16 %v1257, %v1257
      %v1325 = vpack.c.bf16 %v1260, %v1260
      %v1326 = vpack.c.bf16 %v1262, %v1262
      %v1327 = vpack.c.bf16 %v1265, %v1265
      %v1328 = vpack.c.bf16 %v1267, %v1267
      %v1329 = vpack.c.bf16 %v1270, %v1270
      %v1330 = vpack.c.bf16 %v1272, %v1272
      %v1331 = vpack.c.bf16 %v1275, %v1275
      %v1332 = vpack.c.bf16 %v1277, %v1277
      %v1333 = vpack.c.bf16 %v1280, %v1280
      %v1334 = vpack.c.bf16 %v1282, %v1282
      %v1335 = vpack.c.bf16 %v1285, %v1285
      %v1336 = vpack.c.bf16 %v1287, %v1287
      %v1337 = vpack.c.bf16 %v1290, %v1290
      %v1338 = vpack.c.bf16 %v1292, %v1292
      %v1339 = vpack.c.bf16 %v1295, %v1295
      %v1340 = vpack.c.bf16 %v1297, %v1297
      %v1341 = vpack.c.bf16 %v1300, %v1300
      %v1342 = vpack.c.bf16 %v1302, %v1302
      %v1343 = vpack.c.bf16 %v1305, %v1305
      %v1344 = vpack.c.bf16 %v1307, %v1307
      %v1345 = vld [vmem:[%s4] sm:$0xf]
      %v1346 = vld [vmem:[%s4 + $0x4] sm:$0xf]
      %v1347 = vld [vmem:[%s4 + $0x8] sm:$0xf]
      %v1348 = vld [vmem:[%s4 + $0xc] sm:$0xf]
      %v1349 = vld [vmem:[%s4 + $0x10] sm:$0xf]
      %v1350 = vld [vmem:[%s4 + $0x14] sm:$0xf]
      %v1351 = vld [vmem:[%s4 + $0x18] sm:$0xf]
      %v1352 = vld [vmem:[%s4 + $0x1c] sm:$0xf]
      %s1353 = scalar_lea.vmem %s4, 32
      %v1354 = vld [vmem:[%s1353] sm:$0xf]
      %v1355 = vld [vmem:[%s1353 + $0x4] sm:$0xf]
      %v1356 = vld [vmem:[%s1353 + $0x8] sm:$0xf]
      %v1357 = vld [vmem:[%s1353 + $0xc] sm:$0xf]
      %v1358 = vld [vmem:[%s1353 + $0x10] sm:$0xf]
      %v1359 = vld [vmem:[%s1353 + $0x14] sm:$0xf]
      %v1360 = vld [vmem:[%s1353 + $0x18] sm:$0xf]
      %v1361 = vld [vmem:[%s1353 + $0x1c] sm:$0xf]
      %v1366 = vunpack.c.l.b16 %v1313
      %v1367 = vunpack.c.l.b16 %v1314
      %v1368 = vunpack.c.l.b16 %v1315
      %v1369 = vunpack.c.l.b16 %v1316
      %v1370 = vpack.c.b16 %v1367, %v1366
      %v1371 = vpack.c.b16 %v1369, %v1368
      %v1380 = vunpack.c.l.b16 %v1354
      %v1381 = vunpack.c.l.b16 %v1355
      %v1382 = vunpack.c.l.b16 %v1356
      %v1383 = vunpack.c.l.b16 %v1357
      %v1384 = vunpack.c.l.b16 %v1358
      %v1385 = vunpack.c.l.b16 %v1359
      %v1386 = vunpack.c.l.b16 %v1360
      %v1387 = vunpack.c.l.b16 %v1361
      %v1388 = vpack.c.b16 %v1381, %v1380
      %v1389 = vpack.c.b16 %v1383, %v1382
      %v1390 = vpack.c.b16 %v1385, %v1384
      %v1391 = vpack.c.b16 %v1387, %v1386
      %vm1396 = vcmask 523264
      %v1398 = vsel %vm1396, %v1370, 0
      %v1401 = vsel %vm1396, %v1371, 0
      %1403 = vmatpush.bf16.msra.mxu0 0
      %1404 = vmatpush.bf16.msra.mxu0 0
      %1405 = vmatpush.bf16.msra.mxu0 0
      %1406 = vmatpush.bf16.msra.mxu0 0
      %1407 = vmatpush.bf16.msra.mxu0 %v1391
      %1408 = vmatpush.bf16.msra.mxu0 %v1390
      %1409 = vmatpush.bf16.msra.mxu0 %v1389
      %1410 = vmatpush.bf16.msra.mxu0 %v1388
      %1411 = vmatmul.bf16.gmra.mxu0 %v1398
      %v1412 = vpop.f32.mrf.mxu0
      %v1413 = vadd.f32 0.0, %v1412
      %v1414 = vpop.f32.mrf.mxu0
      %v1415 = vadd.f32 0.0, %v1414
      %1416 = vmatmul.bf16.gmra.mxu0 %v1401
      %v1417 = vpop.f32.mrf.mxu0
      %v1418 = vadd.f32 0.0, %v1417
      %v1419 = vpop.f32.mrf.mxu0
      %v1420 = vadd.f32 0.0, %v1419
      %1421 = vdwg.mxu0
      %v1426 = vunpack.c.l.b16 %v1309
      %v1427 = vunpack.c.l.b16 %v1310
      %v1428 = vunpack.c.l.b16 %v1311
      %v1429 = vunpack.c.l.b16 %v1312
      %v1430 = vpack.c.b16 %v1427, %v1426
      %v1431 = vpack.c.b16 %v1429, %v1428
      %v1440 = vunpack.c.l.b16 %v1345
      %v1441 = vunpack.c.l.b16 %v1346
      %v1442 = vunpack.c.l.b16 %v1347
      %v1443 = vunpack.c.l.b16 %v1348
      %v1444 = vunpack.c.l.b16 %v1349
      %v1445 = vunpack.c.l.b16 %v1350
      %v1446 = vunpack.c.l.b16 %v1351
      %v1447 = vunpack.c.l.b16 %v1352
      %v1448 = vpack.c.b16 %v1441, %v1440
      %v1449 = vpack.c.b16 %v1443, %v1442
      %v1450 = vpack.c.b16 %v1445, %v1444
      %v1451 = vpack.c.b16 %v1447, %v1446
      %v1457 = vsel %vm1396, %v1430, 0
      %v1460 = vsel %vm1396, %v1431, 0
      %1462 = vmatpush.bf16.msra.mxu0 0
      %1463 = vmatpush.bf16.msra.mxu0 0
      %1464 = vmatpush.bf16.msra.mxu0 0
      %1465 = vmatpush.bf16.msra.mxu0 0
      %1466 = vmatpush.bf16.msra.mxu0 %v1451
      %1467 = vmatpush.bf16.msra.mxu0 %v1450
      %1468 = vmatpush.bf16.msra.mxu0 %v1449
      %1469 = vmatpush.bf16.msra.mxu0 %v1448
      %1470 = vmatmul.bf16.gmra.mxu0 %v1457
      %v1471 = vpop.f32.mrf.mxu0
      %v1472 = vadd.f32 %v1413, %v1471
      %v1473 = vpop.f32.mrf.mxu0
      %v1474 = vadd.f32 %v1415, %v1473
      %1475 = vmatmul.bf16.gmra.mxu0 %v1460
      %v1476 = vpop.f32.mrf.mxu0
      %v1477 = vadd.f32 %v1418, %v1476
      %v1478 = vpop.f32.mrf.mxu0
      %v1479 = vadd.f32 %v1420, %v1478
      %1480 = vdwg.mxu0
      %s1481 = scalar_lea.vmem %s4, 64
      %v1482 = vld [vmem:[%s1481] sm:$0xf]
      %v1483 = vld [vmem:[%s1481 + $0x4] sm:$0xf]
      %v1484 = vld [vmem:[%s1481 + $0x8] sm:$0xf]
      %v1485 = vld [vmem:[%s1481 + $0xc] sm:$0xf]
      %v1486 = vld [vmem:[%s1481 + $0x10] sm:$0xf]
      %v1487 = vld [vmem:[%s1481 + $0x14] sm:$0xf]
      %v1488 = vld [vmem:[%s1481 + $0x18] sm:$0xf]
      %v1489 = vld [vmem:[%s1481 + $0x1c] sm:$0xf]
      %v1494 = vunpack.c.l.b16 %v1317
      %v1495 = vunpack.c.l.b16 %v1318
      %v1496 = vunpack.c.l.b16 %v1319
      %v1497 = vunpack.c.l.b16 %v1320
      %v1498 = vpack.c.b16 %v1495, %v1494
      %v1499 = vpack.c.b16 %v1497, %v1496
      %v1508 = vunpack.c.l.b16 %v1482
      %v1509 = vunpack.c.l.b16 %v1483
      %v1510 = vunpack.c.l.b16 %v1484
      %v1511 = vunpack.c.l.b16 %v1485
      %v1512 = vunpack.c.l.b16 %v1486
      %v1513 = vunpack.c.l.b16 %v1487
      %v1514 = vunpack.c.l.b16 %v1488
      %v1515 = vunpack.c.l.b16 %v1489
      %v1516 = vpack.c.b16 %v1509, %v1508
      %v1517 = vpack.c.b16 %v1511, %v1510
      %v1518 = vpack.c.b16 %v1513, %v1512
      %v1519 = vpack.c.b16 %v1515, %v1514
      %v1525 = vsel %vm1396, %v1498, 0
      %v1528 = vsel %vm1396, %v1499, 0
      %1530 = vmatpush.bf16.msra.mxu0 0
      %1531 = vmatpush.bf16.msra.mxu0 0
      %1532 = vmatpush.bf16.msra.mxu0 0
      %1533 = vmatpush.bf16.msra.mxu0 0
      %1534 = vmatpush.bf16.msra.mxu0 %v1519
      %1535 = vmatpush.bf16.msra.mxu0 %v1518
      %1536 = vmatpush.bf16.msra.mxu0 %v1517
      %1537 = vmatpush.bf16.msra.mxu0 %v1516
      %1538 = vmatmul.bf16.gmra.mxu0 %v1525
      %v1539 = vpop.f32.mrf.mxu0
      %v1540 = vadd.f32 0.0, %v1539
      %v1541 = vpop.f32.mrf.mxu0
      %v1542 = vadd.f32 0.0, %v1541
      %1543 = vmatmul.bf16.gmra.mxu0 %v1528
      %v1544 = vpop.f32.mrf.mxu0
      %v1545 = vadd.f32 0.0, %v1544
      %v1546 = vpop.f32.mrf.mxu0
      %v1547 = vadd.f32 0.0, %v1546
      %1548 = vdwg.mxu0
      %v1549 = vadd.f32 %v1472, %v1540
      %v1550 = vadd.f32 %v1474, %v1542
      %v1551 = vadd.f32 %v1477, %v1545
      %v1552 = vadd.f32 %v1479, %v1547
      %s1553 = scalar_lea.vmem %s4, 96
      %v1554 = vld [vmem:[%s1553] sm:$0xf]
      %v1555 = vld [vmem:[%s1553 + $0x4] sm:$0xf]
      %v1556 = vld [vmem:[%s1553 + $0x8] sm:$0xf]
      %v1557 = vld [vmem:[%s1553 + $0xc] sm:$0xf]
      %v1558 = vld [vmem:[%s1553 + $0x10] sm:$0xf]
      %v1559 = vld [vmem:[%s1553 + $0x14] sm:$0xf]
      %v1560 = vld [vmem:[%s1553 + $0x18] sm:$0xf]
      %v1561 = vld [vmem:[%s1553 + $0x1c] sm:$0xf]
      %v1566 = vunpack.c.l.b16 %v1321
      %v1567 = vunpack.c.l.b16 %v1322
      %v1568 = vunpack.c.l.b16 %v1323
      %v1569 = vunpack.c.l.b16 %v1324
      %v1570 = vpack.c.b16 %v1567, %v1566
      %v1571 = vpack.c.b16 %v1569, %v1568
      %v1580 = vunpack.c.l.b16 %v1554
      %v1581 = vunpack.c.l.b16 %v1555
      %v1582 = vunpack.c.l.b16 %v1556
      %v1583 = vunpack.c.l.b16 %v1557
      %v1584 = vunpack.c.l.b16 %v1558
      %v1585 = vunpack.c.l.b16 %v1559
      %v1586 = vunpack.c.l.b16 %v1560
      %v1587 = vunpack.c.l.b16 %v1561
      %v1588 = vpack.c.b16 %v1581, %v1580
      %v1589 = vpack.c.b16 %v1583, %v1582
      %v1590 = vpack.c.b16 %v1585, %v1584
      %v1591 = vpack.c.b16 %v1587, %v1586
      %v1597 = vsel %vm1396, %v1570, 0
      %v1600 = vsel %vm1396, %v1571, 0
      %1602 = vmatpush.bf16.msra.mxu0 0
      %1603 = vmatpush.bf16.msra.mxu0 0
      %1604 = vmatpush.bf16.msra.mxu0 0
      %1605 = vmatpush.bf16.msra.mxu0 0
      %1606 = vmatpush.bf16.msra.mxu0 %v1591
      %1607 = vmatpush.bf16.msra.mxu0 %v1590
      %1608 = vmatpush.bf16.msra.mxu0 %v1589
      %1609 = vmatpush.bf16.msra.mxu0 %v1588
      %1610 = vmatmul.bf16.gmra.mxu0 %v1597
      %v1611 = vpop.f32.mrf.mxu0
      %v1612 = vadd.f32 0.0, %v1611
      %v1613 = vpop.f32.mrf.mxu0
      %v1614 = vadd.f32 0.0, %v1613
      %1615 = vmatmul.bf16.gmra.mxu0 %v1600
      %v1616 = vpop.f32.mrf.mxu0
      %v1617 = vadd.f32 0.0, %v1616
      %v1618 = vpop.f32.mrf.mxu0
      %v1619 = vadd.f32 0.0, %v1618
      %1620 = vdwg.mxu0
      %v1621 = vadd.f32 %v1549, %v1612
      %v1622 = vadd.f32 %v1550, %v1614
      %v1623 = vadd.f32 %v1551, %v1617
      %v1624 = vadd.f32 %v1552, %v1619
      %s1625 = scalar_lea.vmem %s4, 128
      %v1626 = vld [vmem:[%s1625] sm:$0xf]
      %v1627 = vld [vmem:[%s1625 + $0x4] sm:$0xf]
      %v1628 = vld [vmem:[%s1625 + $0x8] sm:$0xf]
      %v1629 = vld [vmem:[%s1625 + $0xc] sm:$0xf]
      %v1630 = vld [vmem:[%s1625 + $0x10] sm:$0xf]
      %v1631 = vld [vmem:[%s1625 + $0x14] sm:$0xf]
      %v1632 = vld [vmem:[%s1625 + $0x18] sm:$0xf]
      %v1633 = vld [vmem:[%s1625 + $0x1c] sm:$0xf]
      %v1638 = vunpack.c.l.b16 %v1325
      %v1639 = vunpack.c.l.b16 %v1326
      %v1640 = vunpack.c.l.b16 %v1327
      %v1641 = vunpack.c.l.b16 %v1328
      %v1642 = vpack.c.b16 %v1639, %v1638
      %v1643 = vpack.c.b16 %v1641, %v1640
      %v1652 = vunpack.c.l.b16 %v1626
      %v1653 = vunpack.c.l.b16 %v1627
      %v1654 = vunpack.c.l.b16 %v1628
      %v1655 = vunpack.c.l.b16 %v1629
      %v1656 = vunpack.c.l.b16 %v1630
      %v1657 = vunpack.c.l.b16 %v1631
      %v1658 = vunpack.c.l.b16 %v1632
      %v1659 = vunpack.c.l.b16 %v1633
      %v1660 = vpack.c.b16 %v1653, %v1652
      %v1661 = vpack.c.b16 %v1655, %v1654
      %v1662 = vpack.c.b16 %v1657, %v1656
      %v1663 = vpack.c.b16 %v1659, %v1658
      %v1669 = vsel %vm1396, %v1642, 0
      %v1672 = vsel %vm1396, %v1643, 0
      %1674 = vmatpush.bf16.msra.mxu0 0
      %1675 = vmatpush.bf16.msra.mxu0 0
      %1676 = vmatpush.bf16.msra.mxu0 0
      %1677 = vmatpush.bf16.msra.mxu0 0
      %1678 = vmatpush.bf16.msra.mxu0 %v1663
      %1679 = vmatpush.bf16.msra.mxu0 %v1662
      %1680 = vmatpush.bf16.msra.mxu0 %v1661
      %1681 = vmatpush.bf16.msra.mxu0 %v1660
      %1682 = vmatmul.bf16.gmra.mxu0 %v1669
      %v1683 = vpop.f32.mrf.mxu0
      %v1684 = vadd.f32 0.0, %v1683
      %v1685 = vpop.f32.mrf.mxu0
      %v1686 = vadd.f32 0.0, %v1685
      %1687 = vmatmul.bf16.gmra.mxu0 %v1672
      %v1688 = vpop.f32.mrf.mxu0
      %v1689 = vadd.f32 0.0, %v1688
      %v1690 = vpop.f32.mrf.mxu0
      %v1691 = vadd.f32 0.0, %v1690
      %1692 = vdwg.mxu0
      %v1693 = vadd.f32 %v1621, %v1684
      %v1694 = vadd.f32 %v1622, %v1686
      %v1695 = vadd.f32 %v1623, %v1689
      %v1696 = vadd.f32 %v1624, %v1691
      %s1697 = scalar_lea.vmem %s4, 160
      %v1698 = vld [vmem:[%s1697] sm:$0xf]
      %v1699 = vld [vmem:[%s1697 + $0x4] sm:$0xf]
      %v1700 = vld [vmem:[%s1697 + $0x8] sm:$0xf]
      %v1701 = vld [vmem:[%s1697 + $0xc] sm:$0xf]
      %v1702 = vld [vmem:[%s1697 + $0x10] sm:$0xf]
      %v1703 = vld [vmem:[%s1697 + $0x14] sm:$0xf]
      %v1704 = vld [vmem:[%s1697 + $0x18] sm:$0xf]
      %v1705 = vld [vmem:[%s1697 + $0x1c] sm:$0xf]
      %v1710 = vunpack.c.l.b16 %v1329
      %v1711 = vunpack.c.l.b16 %v1330
      %v1712 = vunpack.c.l.b16 %v1331
      %v1713 = vunpack.c.l.b16 %v1332
      %v1714 = vpack.c.b16 %v1711, %v1710
      %v1715 = vpack.c.b16 %v1713, %v1712
      %v1724 = vunpack.c.l.b16 %v1698
      %v1725 = vunpack.c.l.b16 %v1699
      %v1726 = vunpack.c.l.b16 %v1700
      %v1727 = vunpack.c.l.b16 %v1701
      %v1728 = vunpack.c.l.b16 %v1702
      %v1729 = vunpack.c.l.b16 %v1703
      %v1730 = vunpack.c.l.b16 %v1704
      %v1731 = vunpack.c.l.b16 %v1705
      %v1732 = vpack.c.b16 %v1725, %v1724
      %v1733 = vpack.c.b16 %v1727, %v1726
      %v1734 = vpack.c.b16 %v1729, %v1728
      %v1735 = vpack.c.b16 %v1731, %v1730
      %v1741 = vsel %vm1396, %v1714, 0
      %v1744 = vsel %vm1396, %v1715, 0
      %1746 = vmatpush.bf16.msra.mxu0 0
      %1747 = vmatpush.bf16.msra.mxu0 0
      %1748 = vmatpush.bf16.msra.mxu0 0
      %1749 = vmatpush.bf16.msra.mxu0 0
      %1750 = vmatpush.bf16.msra.mxu0 %v1735
      %1751 = vmatpush.bf16.msra.mxu0 %v1734
      %1752 = vmatpush.bf16.msra.mxu0 %v1733
      %1753 = vmatpush.bf16.msra.mxu0 %v1732
      %1754 = vmatmul.bf16.gmra.mxu0 %v1741
      %v1755 = vpop.f32.mrf.mxu0
      %v1756 = vadd.f32 0.0, %v1755
      %v1757 = vpop.f32.mrf.mxu0
      %v1758 = vadd.f32 0.0, %v1757
      %1759 = vmatmul.bf16.gmra.mxu0 %v1744
      %v1760 = vpop.f32.mrf.mxu0
      %v1761 = vadd.f32 0.0, %v1760
      %v1762 = vpop.f32.mrf.mxu0
      %v1763 = vadd.f32 0.0, %v1762
      %1764 = vdwg.mxu0
      %v1765 = vadd.f32 %v1693, %v1756
      %v1766 = vadd.f32 %v1694, %v1758
      %v1767 = vadd.f32 %v1695, %v1761
      %v1768 = vadd.f32 %v1696, %v1763
      %s1769 = scalar_lea.vmem %s4, 192
      %v1770 = vld [vmem:[%s1769] sm:$0xf]
      %v1771 = vld [vmem:[%s1769 + $0x4] sm:$0xf]
      %v1772 = vld [vmem:[%s1769 + $0x8] sm:$0xf]
      %v1773 = vld [vmem:[%s1769 + $0xc] sm:$0xf]
      %v1774 = vld [vmem:[%s1769 + $0x10] sm:$0xf]
      %v1775 = vld [vmem:[%s1769 + $0x14] sm:$0xf]
      %v1776 = vld [vmem:[%s1769 + $0x18] sm:$0xf]
      %v1777 = vld [vmem:[%s1769 + $0x1c] sm:$0xf]
      %v1782 = vunpack.c.l.b16 %v1333
      %v1783 = vunpack.c.l.b16 %v1334
      %v1784 = vunpack.c.l.b16 %v1335
      %v1785 = vunpack.c.l.b16 %v1336
      %v1786 = vpack.c.b16 %v1783, %v1782
      %v1787 = vpack.c.b16 %v1785, %v1784
      %v1796 = vunpack.c.l.b16 %v1770
      %v1797 = vunpack.c.l.b16 %v1771
      %v1798 = vunpack.c.l.b16 %v1772
      %v1799 = vunpack.c.l.b16 %v1773
      %v1800 = vunpack.c.l.b16 %v1774
      %v1801 = vunpack.c.l.b16 %v1775
      %v1802 = vunpack.c.l.b16 %v1776
      %v1803 = vunpack.c.l.b16 %v1777
      %v1804 = vpack.c.b16 %v1797, %v1796
      %v1805 = vpack.c.b16 %v1799, %v1798
      %v1806 = vpack.c.b16 %v1801, %v1800
      %v1807 = vpack.c.b16 %v1803, %v1802
      %v1813 = vsel %vm1396, %v1786, 0
      %v1816 = vsel %vm1396, %v1787, 0
      %1818 = vmatpush.bf16.msra.mxu0 0
      %1819 = vmatpush.bf16.msra.mxu0 0
      %1820 = vmatpush.bf16.msra.mxu0 0
      %1821 = vmatpush.bf16.msra.mxu0 0
      %1822 = vmatpush.bf16.msra.mxu0 %v1807
      %1823 = vmatpush.bf16.msra.mxu0 %v1806
      %1824 = vmatpush.bf16.msra.mxu0 %v1805
      %1825 = vmatpush.bf16.msra.mxu0 %v1804
      %1826 = vmatmul.bf16.gmra.mxu0 %v1813
      %v1827 = vpop.f32.mrf.mxu0
      %v1828 = vadd.f32 0.0, %v1827
      %v1829 = vpop.f32.mrf.mxu0
      %v1830 = vadd.f32 0.0, %v1829
      %1831 = vmatmul.bf16.gmra.mxu0 %v1816
      %v1832 = vpop.f32.mrf.mxu0
      %v1833 = vadd.f32 0.0, %v1832
      %v1834 = vpop.f32.mrf.mxu0
      %v1835 = vadd.f32 0.0, %v1834
      %1836 = vdwg.mxu0
      %v1837 = vadd.f32 %v1765, %v1828
      %v1838 = vadd.f32 %v1766, %v1830
      %v1839 = vadd.f32 %v1767, %v1833
      %v1840 = vadd.f32 %v1768, %v1835
      %s1841 = scalar_lea.vmem %s4, 224
      %v1842 = vld [vmem:[%s1841] sm:$0xf]
      %v1843 = vld [vmem:[%s1841 + $0x4] sm:$0xf]
      %v1844 = vld [vmem:[%s1841 + $0x8] sm:$0xf]
      %v1845 = vld [vmem:[%s1841 + $0xc] sm:$0xf]
      %v1846 = vld [vmem:[%s1841 + $0x10] sm:$0xf]
      %v1847 = vld [vmem:[%s1841 + $0x14] sm:$0xf]
      %v1848 = vld [vmem:[%s1841 + $0x18] sm:$0xf]
      %v1849 = vld [vmem:[%s1841 + $0x1c] sm:$0xf]
      %v1854 = vunpack.c.l.b16 %v1337
      %v1855 = vunpack.c.l.b16 %v1338
      %v1856 = vunpack.c.l.b16 %v1339
      %v1857 = vunpack.c.l.b16 %v1340
      %v1858 = vpack.c.b16 %v1855, %v1854
      %v1859 = vpack.c.b16 %v1857, %v1856
      %v1868 = vunpack.c.l.b16 %v1842
      %v1869 = vunpack.c.l.b16 %v1843
      %v1870 = vunpack.c.l.b16 %v1844
      %v1871 = vunpack.c.l.b16 %v1845
      %v1872 = vunpack.c.l.b16 %v1846
      %v1873 = vunpack.c.l.b16 %v1847
      %v1874 = vunpack.c.l.b16 %v1848
      %v1875 = vunpack.c.l.b16 %v1849
      %v1876 = vpack.c.b16 %v1869, %v1868
      %v1877 = vpack.c.b16 %v1871, %v1870
      %v1878 = vpack.c.b16 %v1873, %v1872
      %v1879 = vpack.c.b16 %v1875, %v1874
      %v1885 = vsel %vm1396, %v1858, 0
      %v1888 = vsel %vm1396, %v1859, 0
      %1890 = vmatpush.bf16.msra.mxu0 0
      %1891 = vmatpush.bf16.msra.mxu0 0
      %1892 = vmatpush.bf16.msra.mxu0 0
      %1893 = vmatpush.bf16.msra.mxu0 0
      %1894 = vmatpush.bf16.msra.mxu0 %v1879
      %1895 = vmatpush.bf16.msra.mxu0 %v1878
      %1896 = vmatpush.bf16.msra.mxu0 %v1877
      %1897 = vmatpush.bf16.msra.mxu0 %v1876
      %1898 = vmatmul.bf16.gmra.mxu0 %v1885
      %v1899 = vpop.f32.mrf.mxu0
      %v1900 = vadd.f32 0.0, %v1899
      %v1901 = vpop.f32.mrf.mxu0
      %v1902 = vadd.f32 0.0, %v1901
      %1903 = vmatmul.bf16.gmra.mxu0 %v1888
      %v1904 = vpop.f32.mrf.mxu0
      %v1905 = vadd.f32 0.0, %v1904
      %v1906 = vpop.f32.mrf.mxu0
      %v1907 = vadd.f32 0.0, %v1906
      %1908 = vdwg.mxu0
      %v1909 = vadd.f32 %v1837, %v1900
      %v1910 = vadd.f32 %v1838, %v1902
      %v1911 = vadd.f32 %v1839, %v1905
      %v1912 = vadd.f32 %v1840, %v1907
      %s1913 = scalar_lea.vmem %s4, 256
      %v1914 = vld [vmem:[%s1913] sm:$0xf]
      %v1915 = vld [vmem:[%s1913 + $0x4] sm:$0xf]
      %v1916 = vld [vmem:[%s1913 + $0x8] sm:$0xf]
      %v1917 = vld [vmem:[%s1913 + $0xc] sm:$0xf]
      %v1918 = vld [vmem:[%s1913 + $0x10] sm:$0xf]
      %v1919 = vld [vmem:[%s1913 + $0x14] sm:$0xf]
      %v1920 = vld [vmem:[%s1913 + $0x18] sm:$0xf]
      %v1921 = vld [vmem:[%s1913 + $0x1c] sm:$0xf]
      %v1926 = vunpack.c.l.b16 %v1341
      %v1927 = vunpack.c.l.b16 %v1342
      %v1928 = vunpack.c.l.b16 %v1343
      %v1929 = vunpack.c.l.b16 %v1344
      %v1930 = vpack.c.b16 %v1927, %v1926
      %v1931 = vpack.c.b16 %v1929, %v1928
      %v1940 = vunpack.c.l.b16 %v1914
      %v1941 = vunpack.c.l.b16 %v1915
      %v1942 = vunpack.c.l.b16 %v1916
      %v1943 = vunpack.c.l.b16 %v1917
      %v1944 = vunpack.c.l.b16 %v1918
      %v1945 = vunpack.c.l.b16 %v1919
      %v1946 = vunpack.c.l.b16 %v1920
      %v1947 = vunpack.c.l.b16 %v1921
      %v1948 = vpack.c.b16 %v1941, %v1940
      %v1949 = vpack.c.b16 %v1943, %v1942
      %v1950 = vpack.c.b16 %v1945, %v1944
      %v1951 = vpack.c.b16 %v1947, %v1946
      %v1957 = vsel %vm1396, %v1930, 0
      %v1960 = vsel %vm1396, %v1931, 0
      %1962 = vmatpush.bf16.msra.mxu0 0
      %1963 = vmatpush.bf16.msra.mxu0 0
      %1964 = vmatpush.bf16.msra.mxu0 0
      %1965 = vmatpush.bf16.msra.mxu0 0
      %1966 = vmatpush.bf16.msra.mxu0 %v1951
      %1967 = vmatpush.bf16.msra.mxu0 %v1950
      %1968 = vmatpush.bf16.msra.mxu0 %v1949
      %1969 = vmatpush.bf16.msra.mxu0 %v1948
      %1970 = vmatmul.bf16.gmra.mxu0 %v1957
      %v1971 = vpop.f32.mrf.mxu0
      %v1972 = vadd.f32 0.0, %v1971
      %v1973 = vpop.f32.mrf.mxu0
      %v1974 = vadd.f32 0.0, %v1973
      %1975 = vmatmul.bf16.gmra.mxu0 %v1960
      %v1976 = vpop.f32.mrf.mxu0
      %v1977 = vadd.f32 0.0, %v1976
      %v1978 = vpop.f32.mrf.mxu0
      %v1979 = vadd.f32 0.0, %v1978
      %1980 = vdwg.mxu0
      %v1981 = vadd.f32 %v1909, %v1972
      %v1982 = vadd.f32 %v1910, %v1974
      %v1983 = vadd.f32 %v1911, %v1977
      %v1984 = vadd.f32 %v1912, %v1979
      %v1985 = vld [vmem:[%s5] sm:$0x1]
      %v1987 = vperm.slane %v1985, 0
      %v1989 = vadd.f32 %v1981, %v1987
      %v1990 = vadd.f32 %v1982, %v1987
      %v1991 = vadd.f32 %v1983, %v1987
      %v1992 = vadd.f32 %v1984, %v1987
      %v1993 = vmax.f32 %v1989, 0.0
      %v1994 = vmax.f32 %v1990, 0.0
      %v1995 = vmax.f32 %v1991, 0.0
      %v1996 = vmax.f32 %v1992, 0.0
      %v1997 = vpack.c.bf16 %v1994, %v1993
      %v1998 = vpack.c.bf16 %v1996, %v1995
      %v1999 = vld [vmem:[%s6] sm:$0xff]
      %v2000 = vld [vmem:[%s6 + $0x8] sm:$0xff]
      %v2001 = vld [vmem:[%s6 + $0x10] sm:$0xff]
      %v2002 = vld [vmem:[%s6 + $0x18] sm:$0xff]
      %v2003 = vld [vmem:[%s6 + $0x20] sm:$0xff]
      %v2004 = vld [vmem:[%s6 + $0x28] sm:$0xff]
      %v2005 = vld [vmem:[%s6 + $0x30] sm:$0xff]
      %v2006 = vld [vmem:[%s6 + $0x38] sm:$0xff]
      %v2007 = vld [vmem:[%s6 + $0x40] sm:$0xff]
      %v2008 = vld [vmem:[%s6 + $0x48] sm:$0xff]
      %v2009 = vld [vmem:[%s6 + $0x50] sm:$0xff]
      %v2010 = vld [vmem:[%s6 + $0x58] sm:$0xff]
      %v2011 = vld [vmem:[%s6 + $0x60] sm:$0xff]
      %v2012 = vld [vmem:[%s6 + $0x68] sm:$0xff]
      %v2013 = vld [vmem:[%s6 + $0x70] sm:$0xff]
      %v2014 = vld [vmem:[%s6 + $0x78] sm:$0xff]
      %v2015 = vld [vmem:[%s6 + $0x80] sm:$0xff]
      %v2016 = vld [vmem:[%s6 + $0x88] sm:$0xff]
      %v2017 = vld [vmem:[%s6 + $0x90] sm:$0xff]
      %v2018 = vld [vmem:[%s6 + $0x98] sm:$0xff]
      %v2019 = vld [vmem:[%s6 + $0xa0] sm:$0xff]
      %v2020 = vld [vmem:[%s6 + $0xa8] sm:$0xff]
      %v2021 = vld [vmem:[%s6 + $0xb0] sm:$0xff]
      %v2022 = vld [vmem:[%s6 + $0xb8] sm:$0xff]
      %v2023 = vld [vmem:[%s6 + $0xc0] sm:$0xff]
      %v2024 = vld [vmem:[%s6 + $0xc8] sm:$0xff]
      %v2025 = vld [vmem:[%s6 + $0xd0] sm:$0xff]
      %v2026 = vld [vmem:[%s6 + $0xd8] sm:$0xff]
      %v2027 = vld [vmem:[%s6 + $0xe0] sm:$0xff]
      %v2028 = vld [vmem:[%s6 + $0xe8] sm:$0xff]
      %v2029 = vld [vmem:[%s6 + $0xf0] sm:$0xff]
      %v2030 = vld [vmem:[%s6 + $0xf8] sm:$0xff]
      %v2031 = vld [vmem:[%s7] sm:$0xff]
      %v2033 = vperm.slane %v2031, 0
      %v2034 = vperm.slane %v2031, 1
      %v2035 = vperm.slane %v2031, 2
      %v2036 = vperm.slane %v2031, 3
      %v2037 = vperm.slane %v2031, 4
      %v2038 = vperm.slane %v2031, 5
      %v2039 = vperm.slane %v2031, 6
      %v2040 = vperm.slane %v2031, 7
      %v2081 = vunpack.c.l.b16 %v1999
      %v2082 = vunpack.c.h.b16 %v1999
      %v2083 = vunpack.c.l.b16 %v2000
      %v2084 = vunpack.c.h.b16 %v2000
      %v2085 = vunpack.c.l.b16 %v2001
      %v2086 = vunpack.c.h.b16 %v2001
      %v2087 = vunpack.c.l.b16 %v2002
      %v2088 = vunpack.c.h.b16 %v2002
      %v2089 = vunpack.c.l.b16 %v2003
      %v2090 = vunpack.c.h.b16 %v2003
      %v2091 = vunpack.c.l.b16 %v2004
      %v2092 = vunpack.c.h.b16 %v2004
      %v2093 = vunpack.c.l.b16 %v2005
      %v2094 = vunpack.c.h.b16 %v2005
      %v2095 = vunpack.c.l.b16 %v2006
      %v2096 = vunpack.c.h.b16 %v2006
      %v2097 = vunpack.c.l.b16 %v2007
      %v2098 = vunpack.c.h.b16 %v2007
      %v2099 = vunpack.c.l.b16 %v2008
      %v2100 = vunpack.c.h.b16 %v2008
      %v2101 = vunpack.c.l.b16 %v2009
      %v2102 = vunpack.c.h.b16 %v2009
      %v2103 = vunpack.c.l.b16 %v2010
      %v2104 = vunpack.c.h.b16 %v2010
      %v2105 = vunpack.c.l.b16 %v2011
      %v2106 = vunpack.c.h.b16 %v2011
      %v2107 = vunpack.c.l.b16 %v2012
      %v2108 = vunpack.c.h.b16 %v2012
      %v2109 = vunpack.c.l.b16 %v2013
      %v2110 = vunpack.c.h.b16 %v2013
      %v2111 = vunpack.c.l.b16 %v2014
      %v2112 = vunpack.c.h.b16 %v2014
      %v2113 = vunpack.c.l.b16 %v2015
      %v2114 = vunpack.c.h.b16 %v2015
      %v2115 = vunpack.c.l.b16 %v2016
      %v2116 = vunpack.c.h.b16 %v2016
      %v2117 = vunpack.c.l.b16 %v2017
      %v2118 = vunpack.c.h.b16 %v2017
      %v2119 = vunpack.c.l.b16 %v2018
      %v2120 = vunpack.c.h.b16 %v2018
      %v2121 = vunpack.c.l.b16 %v2019
      %v2122 = vunpack.c.h.b16 %v2019
      %v2123 = vunpack.c.l.b16 %v2020
      %v2124 = vunpack.c.h.b16 %v2020
      %v2125 = vunpack.c.l.b16 %v2021
      %v2126 = vunpack.c.h.b16 %v2021
      %v2127 = vunpack.c.l.b16 %v2022
      %v2128 = vunpack.c.h.b16 %v2022
      %v2129 = vunpack.c.l.b16 %v2023
      %v2130 = vunpack.c.h.b16 %v2023
      %v2131 = vunpack.c.l.b16 %v2024
      %v2132 = vunpack.c.h.b16 %v2024
      %v2133 = vunpack.c.l.b16 %v2025
      %v2134 = vunpack.c.h.b16 %v2025
      %v2135 = vunpack.c.l.b16 %v2026
      %v2136 = vunpack.c.h.b16 %v2026
      %v2137 = vunpack.c.l.b16 %v2027
      %v2138 = vunpack.c.h.b16 %v2027
      %v2139 = vunpack.c.l.b16 %v2028
      %v2140 = vunpack.c.h.b16 %v2028
      %v2141 = vunpack.c.l.b16 %v2029
      %v2142 = vunpack.c.h.b16 %v2029
      %v2143 = vunpack.c.l.b16 %v2030
      %v2144 = vunpack.c.h.b16 %v2030
      %v2145 = vpack.c.b16 %v2089, %v2081
      %v2146 = vpack.c.b16 %v2090, %v2082
      %v2147 = vpack.c.b16 %v2091, %v2083
      %v2148 = vpack.c.b16 %v2092, %v2084
      %v2149 = vpack.c.b16 %v2093, %v2085
      %v2150 = vpack.c.b16 %v2094, %v2086
      %v2151 = vpack.c.b16 %v2095, %v2087
      %v2152 = vpack.c.b16 %v2096, %v2088
      %v2153 = vpack.c.b16 %v2105, %v2097
      %v2154 = vpack.c.b16 %v2106, %v2098
      %v2155 = vpack.c.b16 %v2107, %v2099
      %v2156 = vpack.c.b16 %v2108, %v2100
      %v2157 = vpack.c.b16 %v2109, %v2101
      %v2158 = vpack.c.b16 %v2110, %v2102
      %v2159 = vpack.c.b16 %v2111, %v2103
      %v2160 = vpack.c.b16 %v2112, %v2104
      %v2161 = vpack.c.b16 %v2121, %v2113
      %v2162 = vpack.c.b16 %v2122, %v2114
      %v2163 = vpack.c.b16 %v2123, %v2115
      %v2164 = vpack.c.b16 %v2124, %v2116
      %v2165 = vpack.c.b16 %v2125, %v2117
      %v2166 = vpack.c.b16 %v2126, %v2118
      %v2167 = vpack.c.b16 %v2127, %v2119
      %v2168 = vpack.c.b16 %v2128, %v2120
      %v2169 = vpack.c.b16 %v2137, %v2129
      %v2170 = vpack.c.b16 %v2138, %v2130
      %v2171 = vpack.c.b16 %v2139, %v2131
      %v2172 = vpack.c.b16 %v2140, %v2132
      %v2173 = vpack.c.b16 %v2141, %v2133
      %v2174 = vpack.c.b16 %v2142, %v2134
      %v2175 = vpack.c.b16 %v2143, %v2135
      %v2176 = vpack.c.b16 %v2144, %v2136
      %v2210 = vsel %vm1396, %v1997, 0
      %v2213 = vsel %vm1396, %v1998, 0
      %2215 = vmatpush.bf16.msra.mxu0 0
      %2216 = vmatpush.bf16.msra.mxu0 0
      %2217 = vmatpush.bf16.msra.mxu0 0
      %2218 = vmatpush.bf16.msra.mxu0 0
      %2219 = vmatpush.bf16.msra.mxu0 %v2169
      %2220 = vmatpush.bf16.msra.mxu0 %v2161
      %2221 = vmatpush.bf16.msra.mxu0 %v2153
      %2222 = vmatpush.bf16.msra.mxu0 %v2145
      %2223 = vmatmul.bf16.gmra.mxu0 %v2210
      %v2224 = vpop.f32.mrf.mxu0
      %v2225 = vadd.f32 %v2033, %v2224
      %v2226 = vpop.f32.mrf.mxu0
      %v2227 = vadd.f32 %v2033, %v2226
      %2228 = vmatmul.bf16.gmra.mxu0 %v2213
      %v2229 = vpop.f32.mrf.mxu0
      %v2230 = vadd.f32 %v2033, %v2229
      %v2231 = vpop.f32.mrf.mxu0
      %v2232 = vadd.f32 %v2033, %v2231
      %2233 = vdwg.mxu0
      %2234 = vmatpush.bf16.msra.mxu0 0
      %2235 = vmatpush.bf16.msra.mxu0 0
      %2236 = vmatpush.bf16.msra.mxu0 0
      %2237 = vmatpush.bf16.msra.mxu0 0
      %2238 = vmatpush.bf16.msra.mxu0 %v2170
      %2239 = vmatpush.bf16.msra.mxu0 %v2162
      %2240 = vmatpush.bf16.msra.mxu0 %v2154
      %2241 = vmatpush.bf16.msra.mxu0 %v2146
      %2242 = vmatmul.bf16.gmra.mxu0 %v2210
      %v2243 = vpop.f32.mrf.mxu0
      %v2244 = vadd.f32 %v2034, %v2243
      %v2245 = vpop.f32.mrf.mxu0
      %v2246 = vadd.f32 %v2034, %v2245
      %2247 = vmatmul.bf16.gmra.mxu0 %v2213
      %v2248 = vpop.f32.mrf.mxu0
      %v2249 = vadd.f32 %v2034, %v2248
      %v2250 = vpop.f32.mrf.mxu0
      %v2251 = vadd.f32 %v2034, %v2250
      %2252 = vdwg.mxu0
      %2253 = vmatpush.bf16.msra.mxu0 0
      %2254 = vmatpush.bf16.msra.mxu0 0
      %2255 = vmatpush.bf16.msra.mxu0 0
      %2256 = vmatpush.bf16.msra.mxu0 0
      %2257 = vmatpush.bf16.msra.mxu0 %v2171
      %2258 = vmatpush.bf16.msra.mxu0 %v2163
      %2259 = vmatpush.bf16.msra.mxu0 %v2155
      %2260 = vmatpush.bf16.msra.mxu0 %v2147
      %2261 = vmatmul.bf16.gmra.mxu0 %v2210
      %v2262 = vpop.f32.mrf.mxu0
      %v2263 = vadd.f32 %v2035, %v2262
      %v2264 = vpop.f32.mrf.mxu0
      %v2265 = vadd.f32 %v2035, %v2264
      %2266 = vmatmul.bf16.gmra.mxu0 %v2213
      %v2267 = vpop.f32.mrf.mxu0
      %v2268 = vadd.f32 %v2035, %v2267
      %v2269 = vpop.f32.mrf.mxu0
      %v2270 = vadd.f32 %v2035, %v2269
      %2271 = vdwg.mxu0
      %2272 = vmatpush.bf16.msra.mxu0 0
      %2273 = vmatpush.bf16.msra.mxu0 0
      %2274 = vmatpush.bf16.msra.mxu0 0
      %2275 = vmatpush.bf16.msra.mxu0 0
      %2276 = vmatpush.bf16.msra.mxu0 %v2172
      %2277 = vmatpush.bf16.msra.mxu0 %v2164
      %2278 = vmatpush.bf16.msra.mxu0 %v2156
      %2279 = vmatpush.bf16.msra.mxu0 %v2148
      %2280 = vmatmul.bf16.gmra.mxu0 %v2210
      %v2281 = vpop.f32.mrf.mxu0
      %v2282 = vadd.f32 %v2036, %v2281
      %v2283 = vpop.f32.mrf.mxu0
      %v2284 = vadd.f32 %v2036, %v2283
      %2285 = vmatmul.bf16.gmra.mxu0 %v2213
      %v2286 = vpop.f32.mrf.mxu0
      %v2287 = vadd.f32 %v2036, %v2286
      %v2288 = vpop.f32.mrf.mxu0
      %v2289 = vadd.f32 %v2036, %v2288
      %2290 = vdwg.mxu0
      %2291 = vmatpush.bf16.msra.mxu0 0
      %2292 = vmatpush.bf16.msra.mxu0 0
      %2293 = vmatpush.bf16.msra.mxu0 0
      %2294 = vmatpush.bf16.msra.mxu0 0
      %2295 = vmatpush.bf16.msra.mxu0 %v2173
      %2296 = vmatpush.bf16.msra.mxu0 %v2165
      %2297 = vmatpush.bf16.msra.mxu0 %v2157
      %2298 = vmatpush.bf16.msra.mxu0 %v2149
      %2299 = vmatmul.bf16.gmra.mxu0 %v2210
      %v2300 = vpop.f32.mrf.mxu0
      %v2301 = vadd.f32 %v2037, %v2300
      %v2302 = vpop.f32.mrf.mxu0
      %v2303 = vadd.f32 %v2037, %v2302
      %2304 = vmatmul.bf16.gmra.mxu0 %v2213
      %v2305 = vpop.f32.mrf.mxu0
      %v2306 = vadd.f32 %v2037, %v2305
      %v2307 = vpop.f32.mrf.mxu0
      %v2308 = vadd.f32 %v2037, %v2307
      %2309 = vdwg.mxu0
      %2310 = vmatpush.bf16.msra.mxu0 0
      %2311 = vmatpush.bf16.msra.mxu0 0
      %2312 = vmatpush.bf16.msra.mxu0 0
      %2313 = vmatpush.bf16.msra.mxu0 0
      %2314 = vmatpush.bf16.msra.mxu0 %v2174
      %2315 = vmatpush.bf16.msra.mxu0 %v2166
      %2316 = vmatpush.bf16.msra.mxu0 %v2158
      %2317 = vmatpush.bf16.msra.mxu0 %v2150
      %2318 = vmatmul.bf16.gmra.mxu0 %v2210
      %v2319 = vpop.f32.mrf.mxu0
      %v2320 = vadd.f32 %v2038, %v2319
      %v2321 = vpop.f32.mrf.mxu0
      %v2322 = vadd.f32 %v2038, %v2321
      %2323 = vmatmul.bf16.gmra.mxu0 %v2213
      %v2324 = vpop.f32.mrf.mxu0
      %v2325 = vadd.f32 %v2038, %v2324
      %v2326 = vpop.f32.mrf.mxu0
      %v2327 = vadd.f32 %v2038, %v2326
      %2328 = vdwg.mxu0
      %2329 = vmatpush.bf16.msra.mxu0 0
      %2330 = vmatpush.bf16.msra.mxu0 0
      %2331 = vmatpush.bf16.msra.mxu0 0
      %2332 = vmatpush.bf16.msra.mxu0 0
      %2333 = vmatpush.bf16.msra.mxu0 %v2175
      %2334 = vmatpush.bf16.msra.mxu0 %v2167
      %2335 = vmatpush.bf16.msra.mxu0 %v2159
      %2336 = vmatpush.bf16.msra.mxu0 %v2151
      %2337 = vmatmul.bf16.gmra.mxu0 %v2210
      %v2338 = vpop.f32.mrf.mxu0
      %v2339 = vadd.f32 %v2039, %v2338
      %v2340 = vpop.f32.mrf.mxu0
      %v2341 = vadd.f32 %v2039, %v2340
      %2342 = vmatmul.bf16.gmra.mxu0 %v2213
      %v2343 = vpop.f32.mrf.mxu0
      %v2344 = vadd.f32 %v2039, %v2343
      %v2345 = vpop.f32.mrf.mxu0
      %v2346 = vadd.f32 %v2039, %v2345
      %2347 = vdwg.mxu0
      %2348 = vmatpush.bf16.msra.mxu0 0
      %2349 = vmatpush.bf16.msra.mxu0 0
      %2350 = vmatpush.bf16.msra.mxu0 0
      %2351 = vmatpush.bf16.msra.mxu0 0
      %2352 = vmatpush.bf16.msra.mxu0 %v2176
      %2353 = vmatpush.bf16.msra.mxu0 %v2168
      %2354 = vmatpush.bf16.msra.mxu0 %v2160
      %2355 = vmatpush.bf16.msra.mxu0 %v2152
      %2356 = vmatmul.bf16.gmra.mxu0 %v2210
      %v2357 = vpop.f32.mrf.mxu0
      %v2358 = vadd.f32 %v2040, %v2357
      %v2359 = vpop.f32.mrf.mxu0
      %v2360 = vadd.f32 %v2040, %v2359
      %2361 = vmatmul.bf16.gmra.mxu0 %v2213
      %v2362 = vpop.f32.mrf.mxu0
      %v2363 = vadd.f32 %v2040, %v2362
      %v2364 = vpop.f32.mrf.mxu0
      %v2365 = vadd.f32 %v2040, %v2364
      %2366 = vdwg.mxu0
      %v2367 = vadd.f32 %v2225, %v307
      %v2368 = vadd.f32 %v2244, %v308
      %v2369 = vadd.f32 %v2263, %v309
      %v2370 = vadd.f32 %v2282, %v310
      %v2371 = vadd.f32 %v2301, %v311
      %v2372 = vadd.f32 %v2320, %v312
      %v2373 = vadd.f32 %v2339, %v313
      %v2374 = vadd.f32 %v2358, %v314
      %v2375 = vadd.f32 %v2227, %v315
      %v2376 = vadd.f32 %v2246, %v316
      %v2377 = vadd.f32 %v2265, %v317
      %v2378 = vadd.f32 %v2284, %v318
      %v2379 = vadd.f32 %v2303, %v319
      %v2380 = vadd.f32 %v2322, %v320
      %v2381 = vadd.f32 %v2341, %v321
      %v2382 = vadd.f32 %v2360, %v322
      %v2383 = vadd.f32 %v2230, %v323
      %v2384 = vadd.f32 %v2249, %v324
      %v2385 = vadd.f32 %v2268, %v325
      %v2386 = vadd.f32 %v2287, %v326
      %v2387 = vadd.f32 %v2306, %v327
      %v2388 = vadd.f32 %v2325, %v328
      %v2389 = vadd.f32 %v2344, %v329
      %v2390 = vadd.f32 %v2363, %v330
      %v2391 = vadd.f32 %v2232, %v331
      %v2392 = vadd.f32 %v2251, %v332
      %v2393 = vadd.f32 %v2270, %v333
      %v2394 = vadd.f32 %v2289, %v334
      %v2395 = vadd.f32 %v2308, %v335
      %v2396 = vadd.f32 %v2327, %v336
      %v2397 = vadd.f32 %v2346, %v337
      %v2398 = vadd.f32 %v2365, %v338
      %v2399 = vmax.f32 %v2367, 0.0
      %v2400 = vmax.f32 %v2368, 0.0
      %v2401 = vmax.f32 %v2369, 0.0
      %v2402 = vmax.f32 %v2370, 0.0
      %v2403 = vmax.f32 %v2371, 0.0
      %v2404 = vmax.f32 %v2372, 0.0
      %v2405 = vmax.f32 %v2373, 0.0
      %v2406 = vmax.f32 %v2374, 0.0
      %v2407 = vmax.f32 %v2375, 0.0
      %v2408 = vmax.f32 %v2376, 0.0
      %v2409 = vmax.f32 %v2377, 0.0
      %v2410 = vmax.f32 %v2378, 0.0
      %v2411 = vmax.f32 %v2379, 0.0
      %v2412 = vmax.f32 %v2380, 0.0
      %v2413 = vmax.f32 %v2381, 0.0
      %v2414 = vmax.f32 %v2382, 0.0
      %v2415 = vmax.f32 %v2383, 0.0
      %v2416 = vmax.f32 %v2384, 0.0
      %v2417 = vmax.f32 %v2385, 0.0
      %v2418 = vmax.f32 %v2386, 0.0
      %v2419 = vmax.f32 %v2387, 0.0
      %v2420 = vmax.f32 %v2388, 0.0
      %v2421 = vmax.f32 %v2389, 0.0
      %v2422 = vmax.f32 %v2390, 0.0
      %v2423 = vmax.f32 %v2391, 0.0
      %v2424 = vmax.f32 %v2392, 0.0
      %v2425 = vmax.f32 %v2393, 0.0
      %v2426 = vmax.f32 %v2394, 0.0
      %v2427 = vmax.f32 %v2395, 0.0
      %v2428 = vmax.f32 %v2396, 0.0
      %v2429 = vmax.f32 %v2397, 0.0
      %v2430 = vmax.f32 %v2398, 0.0
      %2431 = vst [vmem:[%s305] sm:$0xff] %v2399
      %2432 = vst [vmem:[%s305 + $0x8] sm:$0xff] %v2400
      %2433 = vst [vmem:[%s305 + $0x10] sm:$0xff] %v2401
      %2434 = vst [vmem:[%s305 + $0x18] sm:$0xff] %v2402
      %2435 = vst [vmem:[%s305 + $0x20] sm:$0xff] %v2403
      %2436 = vst [vmem:[%s305 + $0x28] sm:$0xff] %v2404
      %2437 = vst [vmem:[%s305 + $0x30] sm:$0xff] %v2405
      %2438 = vst [vmem:[%s305 + $0x38] sm:$0xff] %v2406
      %2439 = vst [vmem:[%s305 + $0x40] sm:$0xff] %v2407
      %2440 = vst [vmem:[%s305 + $0x48] sm:$0xff] %v2408
      %2441 = vst [vmem:[%s305 + $0x50] sm:$0xff] %v2409
      %2442 = vst [vmem:[%s305 + $0x58] sm:$0xff] %v2410
      %2443 = vst [vmem:[%s305 + $0x60] sm:$0xff] %v2411
      %2444 = vst [vmem:[%s305 + $0x68] sm:$0xff] %v2412
      %2445 = vst [vmem:[%s305 + $0x70] sm:$0xff] %v2413
      %2446 = vst [vmem:[%s305 + $0x78] sm:$0xff] %v2414
      %2447 = vst [vmem:[%s305 + $0x80] sm:$0xff] %v2415
      %2448 = vst [vmem:[%s305 + $0x88] sm:$0xff] %v2416
      %2449 = vst [vmem:[%s305 + $0x90] sm:$0xff] %v2417
      %2450 = vst [vmem:[%s305 + $0x98] sm:$0xff] %v2418
      %2451 = vst [vmem:[%s305 + $0xa0] sm:$0xff] %v2419
      %2452 = vst [vmem:[%s305 + $0xa8] sm:$0xff] %v2420
      %2453 = vst [vmem:[%s305 + $0xb0] sm:$0xff] %v2421
      %2454 = vst [vmem:[%s305 + $0xb8] sm:$0xff] %v2422
      %2455 = vst [vmem:[%s305 + $0xc0] sm:$0xff] %v2423
      %2456 = vst [vmem:[%s305 + $0xc8] sm:$0xff] %v2424
      %2457 = vst [vmem:[%s305 + $0xd0] sm:$0xff] %v2425
      %2458 = vst [vmem:[%s305 + $0xd8] sm:$0xff] %v2426
      %2459 = vst [vmem:[%s305 + $0xe0] sm:$0xff] %v2427
      %2460 = vst [vmem:[%s305 + $0xe8] sm:$0xff] %v2428
      %2461 = vst [vmem:[%s305 + $0xf0] sm:$0xff] %v2429
      %2462 = vst [vmem:[%s305 + $0xf8] sm:$0xff] %v2430
      %p2463 = scmp.lt.s32.totalorder %s19, 1
      %s2464 = scalar_select %p2463, %s19, 1
      %s2465 = smul.addr %s2464, 32
      %s2466 = smul.addr %s2465, 8
      %s2467 = scalar_lea.vmem %s8, %s2466
      // Predicated region
      $region53: #{resnext_bottleneck_forward.1} parent=51 // pred_check
        %p2468 = pneg %p210
      $region54: #{resnext_bottleneck_forward.1} parent=51 // pred_check_branch
        %2470 = sbr.rel (%p2468) target = $region56
      $region55: #{resnext_bottleneck_forward.1} parent=51 // pred_region
        _
      $region56: #{resnext_bottleneck_forward.1} parent=51 // pred_fallthru
        _
    $region52: #{resnext_bottleneck_forward.1} parent=5 // pred_fallthru
      _
    %p2471 = scmp.le.s32.totalorder 2, %s14
    // Predicated region
    $region57: #{resnext_bottleneck_forward.1} parent=5 // pred_check
      %p2472 = pneg %p2471
    $region58: #{resnext_bottleneck_forward.1} parent=5 // pred_check_branch
      %2474 = sbr.rel (%p2472) target = $region60
    $region59: #{resnext_bottleneck_forward.1} parent=5 // pred_region
      %s2475 = ssub.s32 %s14, 2
      // Predicated region
      $region61: #{resnext_bottleneck_forward.1} parent=59 // pred_check
        %p2476 = pneg %p216
      $region62: #{resnext_bottleneck_forward.1} parent=59 // pred_check_branch
        %2478 = sbr.rel (%p2476) target = $region64
      $region63: #{resnext_bottleneck_forward.1} parent=59 // pred_region
        %p2479 = scmp.lt.s32.totalorder %s20, 1
        %s2480 = scalar_select %p2479, %s20, 1
        %s2481 = smul.addr %s2480, 32
        %s2482 = smul.addr %s2481, 8
        %s2483 = scalar_lea.vmem %s8, %s2482
      $region64: #{resnext_bottleneck_forward.1} parent=59 // pred_fallthru
        _
    $region60: #{resnext_bottleneck_forward.1} parent=5 // pred_fallthru
      _
  $region6: #{resnext_bottleneck_forward.1} parent=0 // loop_footer
    %s18 = sadd.s32 1, %s14
  $region7: #{resnext_bottleneck_forward.1} parent=0 // loop_footer_branch
    %13 = sbr.rel target = $region3
  $region8: #{resnext_bottleneck_forward.1} parent=0 // loop_exit
    _

</llo_original>
